<compile_context>
chip_gen: v6e
topology: v6e:2x2x1
jax: 0.10.0
libtpu: 0.0.40
codegen_flags: <defaults>
</compile_context>

<pallas_src>
import functools

import jax
import jax.numpy as jnp
from jax import lax
from jax.experimental import pallas as pl
from jax.experimental.pallas import tpu as pltpu

_MASK_VALUE = -1e30  # float32 path of the torch Attention module


def _mha_kernel(xq_ref, xk_ref, xv_ref, wq_ref, wk_ref, wv_ref, *rest,
                h_blk, d_h, lq, seq_len, compute_dtype, has_mask):
    """One (batch, head-block, q-tile) step: shared k/v projection (first q tile),
    q-tile projection, per-head masked softmax attention, lane-dense output stores."""
    if has_mask:
        mask_ref, out_ref, k_sc, v_sc = rest
    else:
        out_ref, k_sc, v_sc = rest
        mask_ref = None

    q_idx = pl.program_id(2)

    # k / v projections for the whole head block, computed ONCE per (batch,
    # head-block) and reused across every q tile.  xk/xv/weight blocks have
    # q-independent index_maps, so Pallas does not re-DMA them across q steps.
    @pl.when(q_idx == 0)
    def _():
        k_sc[...] = jnp.dot(xk_ref[0], wk_ref[0],
                            preferred_element_type=jnp.float32).astype(compute_dtype)
        v_sc[...] = jnp.dot(xv_ref[0], wv_ref[0],
                            preferred_element_type=jnp.float32).astype(compute_dtype)

    # Query projection for this q tile only.  The d_h**-0.5 scale is folded into
    # wq in the wrapper, so there is no extra VPU scaling pass here.
    q = jnp.dot(xq_ref[0], wq_ref[0],
                preferred_element_type=jnp.float32).astype(compute_dtype)  # (Lq, blk_w)

    # Combined diagonal + optional user mask, built in-kernel (no (L, L) f32 mask
    # streamed from HBM; iota/compare/select is VPU work hidden under MXU slack).
    row = lax.broadcasted_iota(jnp.int32, (lq, seq_len), 0) + q_idx * lq
    col = lax.broadcasted_iota(jnp.int32, (lq, seq_len), 1)
    masked = row == col
    if has_mask:
        masked = jnp.logical_or(masked, mask_ref[0] != 0)

    k_all = k_sc[...]
    v_all = v_sc[...]

    for i in range(h_blk):                       # static, fully unrolled
        lo = i * d_h
        qi = q[:, lo:lo + d_h]
        ki = k_all[:, lo:lo + d_h]
        vi = v_all[:, lo:lo + d_h]

        # q @ k^T without materializing k.T (contract dim 1 with dim 1).
        scores = lax.dot_general(qi, ki, (((1,), (1,)), ((), ())),
                                 preferred_element_type=jnp.float32)   # (Lq, L)
        scores = jnp.where(masked, jnp.float32(_MASK_VALUE), scores)   # stays f32

        m = jnp.max(scores, axis=-1, keepdims=True)
        p = jnp.exp(scores - m)
        inv = pl.reciprocal(jnp.sum(p, axis=-1, keepdims=True), approx=True)
        attn = (p * inv).astype(compute_dtype)

        o_i = jnp.dot(attn, vi, preferred_element_type=jnp.float32)   # (Lq, d_h)
        # Per-head store into the output block: ends this head's live range
        # immediately (no list + concatenate keeping all heads live).
        out_ref[0, :, lo:lo + d_h] = o_i.astype(out_ref.dtype)


def _pick_head_block(h, d_h):
    """Heads per grid step.  Prefer a lane width (h_blk*d_h) that is a multiple of
    256 (v6e/v7x MXU width), then 128 (v5e), aiming for >= 256 lanes; otherwise
    fall back to all heads (full-D block, always legal for BlockSpec)."""
    cands = [hb for hb in range(1, h + 1) if h % hb == 0]
    c256 = [hb for hb in cands if (hb * d_h) % 256 == 0]
    c128 = [hb for hb in cands if (hb * d_h) % 128 == 0]
    pool = c256 or c128
    if not pool:
        return h
    for hb in pool:
        if hb * d_h >= 256:
            return hb
    return pool[-1]


def _pick_q_tile(seq_len):
    """Query-tile length: full L when short, otherwise the largest divisor of L
    that is a multiple of 8 and <= 512 (keeps per-step temporaries O(Lq*L))."""
    if seq_len <= 256:
        return seq_len
    best = None
    for t in range(8, min(seq_len, 512) + 1, 8):
        if seq_len % t == 0:
            best = t
    return best if best is not None else seq_len


def multi_head_attention(xq, xk, xv, wq, wk, wv, h, mask=None,
                         mxu_dtype=jnp.bfloat16, q_tile=None):
    """wq/wk/wv are torch-style Linear weights of shape (d_model, d_model), i.e.
    y = x @ W.T (no bias).  mask (optional) is a 0/1 or boolean (B, L, L) array.
    mxu_dtype is the MXU input dtype (default bf16; pass jnp.float32 for the exact
    path).  All accumulation is f32."""
    B, L, D = xq.shape
    assert D % h == 0
    d_h = D // h
    out_dtype = xq.dtype
    compute_dtype = jnp.dtype(mxu_dtype) if mxu_dtype is not None else jnp.dtype(xq.dtype)

    h_blk = _pick_head_block(h, d_h)
    n_blk = h // h_blk
    blk_w = h_blk * d_h

    if q_tile is None:
        q_tile = _pick_q_tile(L)
    assert L % q_tile == 0 and (q_tile % 8 == 0 or q_tile == L)
    n_q = L // q_tile

    # (D_out, D_in) -> (n_blk, D, h_blk*d_h): head g*h_blk+i of block g sits at
    # within-block columns [i*d_h, (i+1)*d_h), so x @ w_block yields that block's
    # slice in the same column order as the final (B, L, D) output.
    def per_block(w, scale=None):
        wt = w.T
        if scale is not None:
            wt = wt * scale
        return jnp.transpose(wt.reshape(D, n_blk, blk_w), (1, 0, 2)).astype(compute_dtype)

    scale = float(d_h) ** -0.5
    wq_b = per_block(wq, scale)      # fold q scale into the weight (free)
    wk_b = per_block(wk)
    wv_b = per_block(wv)
    xq_c = xq.astype(compute_dtype)
    xk_c = xk.astype(compute_dtype)
    xv_c = xv.astype(compute_dtype)

    has_mask = mask is not None

    xq_spec = pl.BlockSpec((1, q_tile, D), lambda b, g, qi: (b, qi, 0))
    xkv_spec = pl.BlockSpec((1, L, D), lambda b, g, qi: (b, 0, 0))
    w_spec = pl.BlockSpec((1, D, blk_w), lambda b, g, qi: (g, 0, 0))
    # Lane-dense store directly into the (B, L, D) result: head block g lands at
    # column offset g*blk_w, q tile qi at row offset qi*q_tile.
    o_spec = pl.BlockSpec((1, q_tile, blk_w), lambda b, g, qi: (b, qi, g))

    in_specs = [xq_spec, xkv_spec, xkv_spec, w_spec, w_spec, w_spec]
    args = [xq_c, xk_c, xv_c, wq_b, wk_b, wv_b]
    if has_mask:
        mask_i8 = (mask != 0).astype(jnp.int8)               # compact user mask
        in_specs.append(pl.BlockSpec((1, q_tile, L), lambda b, g, qi: (b, qi, 0)))
        args.append(mask_i8)

    # Advisory cost estimate for XLA's scheduler.
    c_item = jnp.dtype(compute_dtype).itemsize
    o_item = jnp.dtype(out_dtype).itemsize
    flops = 2 * B * (3 * L * D * D + 2 * L * L * D)
    transcendentals = B * h * L * (L + 1)                     # exp + reciprocal
    bytes_accessed = ((3 * B * L * D + 3 * D * D) * c_item
                      + (B * L * L if has_mask else 0)
                      + B * L * D * o_item)
    cost = pl.CostEstimate(flops=int(flops), transcendentals=int(transcendentals),
                           bytes_accessed=int(bytes_accessed))

    # Scoped-VMEM limit sized from the actual per-step footprint with ~25% headroom
    # (v7x has only 64 MiB physical; defaults can be as low as 16 MiB on v5e).
    footprint = (
        2 * q_tile * D * c_item                  # xq block (double-buffered)
        + 2 * 2 * L * D * c_item                 # xk, xv blocks
        + 3 * 2 * D * blk_w * c_item             # weight blocks
        + 2 * L * blk_w * c_item                 # k / v VMEM scratch
        + 2 * q_tile * blk_w * o_item            # output block
        + (2 * q_tile * L if has_mask else 0)    # int8 mask block
        + q_tile * blk_w * 4                     # q (f32 accumulate)
        + 5 * q_tile * L * 4                     # scores / p / attn / mask temporaries
    )
    vmem_limit = int(min(112 * 1024 * 1024, max(4 * 1024 * 1024, (footprint * 5) // 4)))

    kernel = functools.partial(_mha_kernel, h_blk=h_blk, d_h=d_h, lq=q_tile,
                               seq_len=L, compute_dtype=compute_dtype,
                               has_mask=has_mask)

    out = pl.pallas_call(
        kernel,
        out_shape=jax.ShapeDtypeStruct((B, L, D), out_dtype),
        grid_spec=pltpu.PrefetchScalarGridSpec(
            num_scalar_prefetch=0,
            grid=(B, n_blk, n_q),
            in_specs=in_specs,
            out_specs=o_spec,
            scratch_shapes=[pltpu.VMEM((L, blk_w), compute_dtype),   # k for this block
                            pltpu.VMEM((L, blk_w), compute_dtype)],  # v for this block
        ),
        compiler_params=pltpu.CompilerParams(
            # batch and head-block axes write disjoint output tiles and carry no
            # accumulator -> both parallel (lets v7x's 2 TCs split work even when
            # B is small).  The q axis carries the k/v scratch -> arbitrary.
            dimension_semantics=("parallel", "parallel", "arbitrary"),
            vmem_limit_bytes=vmem_limit),
        cost_estimate=cost,
    )(*args)

    return out


def _reference(xq, xk, xv, wq, wk, wv, h, mask=None):
    """Pure-JAX transcription of the torch module, for verification."""
    B, L, D = xq.shape
    d_h = D // h

    def proj(x, w):
        return (x @ w.T).reshape(B, L, h, d_h).transpose(0, 2, 1, 3)

    q, k, v = proj(xq, wq), proj(xk, wk), proj(xv, wv)
    q = q * (float(d_h) ** -0.5)
    scores = q @ jnp.swapaxes(k, -1, -2)
    i = jnp.arange(L)
    scores = scores.at[:, :, i, i].set(_MASK_VALUE)
    if mask is not None:
        scores = jnp.where(mask[:, None, :, :] != 0, _MASK_VALUE, scores)
    attn = jax.nn.softmax(scores, axis=-1)
    out = attn @ v
    return out.transpose(0, 2, 1, 3).reshape(B, L, D)


if __name__ == "__main__":
    B, L, D, H = 2, 8, 32, 4  # batch, seq, d_model, heads

    root = jax.random.PRNGKey(0)
    kq, kk, kv, kwq, kwk, kwv, km = jax.random.split(root, 7)

    query = jax.random.normal(kq, (B, L, D), dtype=jnp.float32)
    key = jax.random.normal(kk, (B, L, D), dtype=jnp.float32)
    value = jax.random.normal(kv, (B, L, D), dtype=jnp.float32)

    # xavier_uniform_ for a (D, D) Linear weight: bound = sqrt(6 / (D + D))
    bound = (6.0 / (D + D)) ** 0.5
    wq = jax.random.uniform(kwq, (D, D), jnp.float32, -bound, bound)
    wk = jax.random.uniform(kwk, (D, D), jnp.float32, -bound, bound)
    wv = jax.random.uniform(kwv, (D, D), jnp.float32, -bound, bound)

    mask = jax.random.bernoulli(km, 0.25, (B, L, L))  # boolean user mask

    # 1) f32 MXU path, mask=None (tolerance covers the approx reciprocal).
    out = jax.block_until_ready(
        multi_head_attention(query, key, value, wq, wk, wv, H, mask=None,
                             mxu_dtype=jnp.float32))
    ref = _reference(query, key, value, wq, wk, wv, H, mask=None)
    assert out.shape == (B, L, D)
    assert jnp.allclose(out, ref, rtol=5e-3, atol=5e-3), "mismatch vs reference (no mask)"

    # 2) f32 MXU path, with user mask.
    out_m = jax.block_until_ready(
        multi_head_attention(query, key, value, wq, wk, wv, H, mask=mask,
                             mxu_dtype=jnp.float32))
    ref_m = _reference(query, key, value, wq, wk, wv, H, mask=mask)
    assert jnp.allclose(out_m, ref_m, rtol=5e-3, atol=5e-3), "mismatch vs reference (mask)"

    # 3) default bf16-MXU fast path (f32 accumulation); looser tolerance.
    out_bf = jax.block_until_ready(
        multi_head_attention(query, key, value, wq, wk, wv, H, mask=mask))
    assert jnp.allclose(out_bf, ref_m, rtol=5e-2, atol=5e-2), "mismatch vs reference (bf16)"

    # 4) exercise the q-tile axis (multiple q tiles + k/v scratch reuse + diag offset).
    L2 = 32
    kq2, kk2, kv2, km2 = jax.random.split(jax.random.PRNGKey(1), 4)
    query2 = jax.random.normal(kq2, (B, L2, D), dtype=jnp.float32)
    key2 = jax.random.normal(kk2, (B, L2, D), dtype=jnp.float32)
    value2 = jax.random.normal(kv2, (B, L2, D), dtype=jnp.float32)
    mask2 = jax.random.bernoulli(km2, 0.25, (B, L2, L2))
    out_q = jax.block_until_ready(
        multi_head_attention(query2, key2, value2, wq, wk, wv, H, mask=mask2,
                             mxu_dtype=jnp.float32, q_tile=8))
    ref_q = _reference(query2, key2, value2, wq, wk, wv, H, mask=mask2)
    assert jnp.allclose(out_q, ref_q, rtol=5e-3, atol=5e-3), "mismatch vs reference (q-tiled)"

    print("KERNEL_OK")
</pallas_src>

<mosaic_0001>
module attributes {stable_mosaic.version = 11 : i64} {
  func.func @_mha_kernel(%arg0: i32, %arg1: i32, %arg2: i32, %arg3: memref<1x8x32xf32, #tpu.memory_space<vmem>>, %arg4: memref<1x8x32xf32, #tpu.memory_space<vmem>>, %arg5: memref<1x8x32xf32, #tpu.memory_space<vmem>>, %arg6: memref<1x32x32xf32, #tpu.memory_space<vmem>>, %arg7: memref<1x32x32xf32, #tpu.memory_space<vmem>>, %arg8: memref<1x32x32xf32, #tpu.memory_space<vmem>>, %arg9: memref<1x8x32xf32, #tpu.memory_space<vmem>>, %arg10: memref<8x32xf32, #tpu.memory_space<vmem>>, %arg11: memref<8x32xf32, #tpu.memory_space<vmem>>) attributes {dimension_semantics = [#tpu.dimension_semantics<parallel>, #tpu.dimension_semantics<parallel>, #tpu.dimension_semantics<arbitrary>], iteration_bounds = array<i64: 2, 1, 1>, scalar_prefetch = 0 : i64, scratch_operands = 2 : i64, tpu.core_type = #tpu.core_type<tc>, window_params = [{transform_indices = @transform_0, window_bounds = array<i64: 1, 8, 32>}, {transform_indices = @transform_1, window_bounds = array<i64: 1, 8, 32>}, {transform_indices = @transform_2, window_bounds = array<i64: 1, 8, 32>}, {transform_indices = @transform_3, window_bounds = array<i64: 1, 32, 32>}, {transform_indices = @transform_4, window_bounds = array<i64: 1, 32, 32>}, {transform_indices = @transform_5, window_bounds = array<i64: 1, 32, 32>}, {transform_indices = @transform_6, window_bounds = array<i64: 1, 8, 32>}]} {
    %c0_i32 = arith.constant 0 : i32
    %0 = arith.cmpi eq, %arg2, %c0_i32 : i32
    %1 = arith.extui %0 : i1 to i32
    %c0_i32_0 = arith.constant 0 : i32
    %2 = arith.cmpi ne, %1, %c0_i32_0 : i32
    scf.if %2 {
      %c0_39 = arith.constant 0 : index
      %c0_40 = arith.constant 0 : index
      %c0_41 = arith.constant 0 : index
      %96 = vector.load %arg4[%c0_39, %c0_40, %c0_41] : memref<1x8x32xf32, #tpu.memory_space<vmem>>, vector<1x8x32xf32>
      %97 = vector.shape_cast %96 : vector<1x8x32xf32> to vector<8x32xf32>
      %c0_42 = arith.constant 0 : index
      %c0_43 = arith.constant 0 : index
      %c0_44 = arith.constant 0 : index
      %98 = vector.load %arg7[%c0_42, %c0_43, %c0_44] : memref<1x32x32xf32, #tpu.memory_space<vmem>>, vector<1x32x32xf32>
      %99 = vector.shape_cast %98 : vector<1x32x32xf32> to vector<32x32xf32>
      %cst_45 = arith.constant dense<0.000000e+00> : vector<8x32xf32>
      %100 = tpu.matmul %97, %99, %cst_45 {dimension_numbers = #tpu.dot_dimension_numbers<[1], [0], [0], [1], [0, 0, 1, 1], [], []>} : vector<8x32xf32>, vector<32x32xf32>, vector<8x32xf32> -> vector<8x32xf32>
      %c0_46 = arith.constant 0 : index
      %c0_47 = arith.constant 0 : index
      %101 = vector.load %arg10[%c0_46, %c0_47] : memref<8x32xf32, #tpu.memory_space<vmem>>, vector<8x32xf32>
      tpu.vector_store %arg10[%c0_46, %c0_47], %100 {strides = array<i32>} : memref<8x32xf32, #tpu.memory_space<vmem>>, vector<8x32xf32>,
      %c0_48 = arith.constant 0 : index
      %c0_49 = arith.constant 0 : index
      %c0_50 = arith.constant 0 : index
      %102 = vector.load %arg5[%c0_48, %c0_49, %c0_50] : memref<1x8x32xf32, #tpu.memory_space<vmem>>, vector<1x8x32xf32>
      %103 = vector.shape_cast %102 : vector<1x8x32xf32> to vector<8x32xf32>
      %c0_51 = arith.constant 0 : index
      %c0_52 = arith.constant 0 : index
      %c0_53 = arith.constant 0 : index
      %104 = vector.load %arg8[%c0_51, %c0_52, %c0_53] : memref<1x32x32xf32, #tpu.memory_space<vmem>>, vector<1x32x32xf32>
      %105 = vector.shape_cast %104 : vector<1x32x32xf32> to vector<32x32xf32>
      %cst_54 = arith.constant dense<0.000000e+00> : vector<8x32xf32>
      %106 = tpu.matmul %103, %105, %cst_54 {dimension_numbers = #tpu.dot_dimension_numbers<[1], [0], [0], [1], [0, 0, 1, 1], [], []>} : vector<8x32xf32>, vector<32x32xf32>, vector<8x32xf32> -> vector<8x32xf32>
      %c0_55 = arith.constant 0 : index
      %c0_56 = arith.constant 0 : index
      %107 = vector.load %arg11[%c0_55, %c0_56] : memref<8x32xf32, #tpu.memory_space<vmem>>, vector<8x32xf32>
      tpu.vector_store %arg11[%c0_55, %c0_56], %106 {strides = array<i32>} : memref<8x32xf32, #tpu.memory_space<vmem>>, vector<8x32xf32>,
    } else {
    }
    %c0 = arith.constant 0 : index
    %c0_1 = arith.constant 0 : index
    %c0_2 = arith.constant 0 : index
    %3 = vector.load %arg3[%c0, %c0_1, %c0_2] : memref<1x8x32xf32, #tpu.memory_space<vmem>>, vector<1x8x32xf32>
    %4 = vector.shape_cast %3 : vector<1x8x32xf32> to vector<8x32xf32>
    %c0_3 = arith.constant 0 : index
    %c0_4 = arith.constant 0 : index
    %c0_5 = arith.constant 0 : index
    %5 = vector.load %arg6[%c0_3, %c0_4, %c0_5] : memref<1x32x32xf32, #tpu.memory_space<vmem>>, vector<1x32x32xf32>
    %6 = vector.shape_cast %5 : vector<1x32x32xf32> to vector<32x32xf32>
    %cst = arith.constant dense<0.000000e+00> : vector<8x32xf32>
    %7 = tpu.matmul %4, %6, %cst {dimension_numbers = #tpu.dot_dimension_numbers<[1], [0], [0], [1], [0, 0, 1, 1], [], []>} : vector<8x32xf32>, vector<32x32xf32>, vector<8x32xf32> -> vector<8x32xf32>
    %8 = tpu.iota {dimensions = array<i32: 0>} : vector<8x8xi32>
    %c8_i32 = arith.constant 8 : i32
    %9 = arith.muli %arg2, %c8_i32 : i32
    %10 = vector.broadcast %9 : i32 to vector<8x8xi32>
    %11 = arith.addi %8, %10 : vector<8x8xi32>
    %12 = tpu.iota {dimensions = array<i32: 1>} : vector<8x8xi32>
    %13 = arith.cmpi eq, %11, %12 : vector<8x8xi32>
    %c0_6 = arith.constant 0 : index
    %c0_7 = arith.constant 0 : index
    %14 = vector.load %arg10[%c0_6, %c0_7] : memref<8x32xf32, #tpu.memory_space<vmem>>, vector<8x32xf32>
    %c0_8 = arith.constant 0 : index
    %c0_9 = arith.constant 0 : index
    %15 = vector.load %arg11[%c0_8, %c0_9] : memref<8x32xf32, #tpu.memory_space<vmem>>, vector<8x32xf32>
    %16 = vector.extract_strided_slice %7 {offsets = [0, 0], sizes = [8, 8], strides = [1, 1]} : vector<8x32xf32> to vector<8x8xf32>
    %17 = vector.extract_strided_slice %14 {offsets = [0, 0], sizes = [8, 8], strides = [1, 1]} : vector<8x32xf32> to vector<8x8xf32>
    %18 = vector.extract_strided_slice %15 {offsets = [0, 0], sizes = [8, 8], strides = [1, 1]} : vector<8x32xf32> to vector<8x8xf32>
    %cst_10 = arith.constant dense<0.000000e+00> : vector<8x8xf32>
    %19 = tpu.matmul %16, %17, %cst_10 {dimension_numbers = #tpu.dot_dimension_numbers<[1], [1], [0], [0], [0, 0, 1, 0], [], []>} : vector<8x8xf32>, vector<8x8xf32>, vector<8x8xf32> -> vector<8x8xf32>
    %cst_11 = arith.constant -1.000000e+30 : f32
    %20 = vector.broadcast %cst_11 : f32 to vector<8x8xf32>
    %21 = arith.select %13, %20, %19 : vector<8x8xi1>, vector<8x8xf32>
    %cst_12 = arith.constant dense<0xFF800000> : vector<8xf32>
    %22 = vector.multi_reduction <maximumf>, %21, %cst_12 [1] : vector<8x8xf32> to vector<8xf32>
    %23 = vector.shape_cast %22 : vector<8xf32> to vector<8x1xf32>
    %24 = vector.broadcast %23 : vector<8x1xf32> to vector<8x8xf32>
    %25 = arith.subf %21, %24 : vector<8x8xf32>
    %26 = math.exp %25 : vector<8x8xf32>
    %cst_13 = arith.constant dense<0.000000e+00> : vector<8xf32>
    %27 = vector.multi_reduction <add>, %26, %cst_13 [1] : vector<8x8xf32> to vector<8xf32>
    %28 = vector.shape_cast %27 : vector<8xf32> to vector<8x1xf32>
    %29 = tpu.reciprocal %28 {approx = true} : vector<8x1xf32> -> vector<8x1xf32>
    %30 = vector.broadcast %29 : vector<8x1xf32> to vector<8x8xf32>
    %31 = arith.mulf %26, %30 : vector<8x8xf32>
    %cst_14 = arith.constant dense<0.000000e+00> : vector<8x8xf32>
    %32 = tpu.matmul %31, %18, %cst_14 {dimension_numbers = #tpu.dot_dimension_numbers<[1], [0], [0], [1], [0, 0, 1, 1], [], []>} : vector<8x8xf32>, vector<8x8xf32>, vector<8x8xf32> -> vector<8x8xf32>
    %c0_15 = arith.constant 0 : index
    %c0_16 = arith.constant 0 : index
    %c0_17 = arith.constant 0 : index
    %33 = vector.load %arg9[%c0_15, %c0_16, %c0_17] : memref<1x8x32xf32, #tpu.memory_space<vmem>>, vector<1x8x8xf32>
    %34 = vector.shape_cast %33 : vector<1x8x8xf32> to vector<8x8xf32>
    %35 = vector.shape_cast %32 : vector<8x8xf32> to vector<1x8x8xf32>
    tpu.vector_store %arg9[%c0_15, %c0_16, %c0_17], %35 {strides = array<i32>} : memref<1x8x32xf32, #tpu.memory_space<vmem>>, vector<1x8x8xf32>,
    %36 = vector.extract_strided_slice %7 {offsets = [0, 8], sizes = [8, 8], strides = [1, 1]} : vector<8x32xf32> to vector<8x8xf32>
    %37 = vector.extract_strided_slice %14 {offsets = [0, 8], sizes = [8, 8], strides = [1, 1]} : vector<8x32xf32> to vector<8x8xf32>
    %38 = vector.extract_strided_slice %15 {offsets = [0, 8], sizes = [8, 8], strides = [1, 1]} : vector<8x32xf32> to vector<8x8xf32>
    %cst_18 = arith.constant dense<0.000000e+00> : vector<8x8xf32>
    %39 = tpu.matmul %36, %37, %cst_18 {dimension_numbers = #tpu.dot_dimension_numbers<[1], [1], [0], [0], [0, 0, 1, 0], [], []>} : vector<8x8xf32>, vector<8x8xf32>, vector<8x8xf32> -> vector<8x8xf32>
    %cst_19 = arith.constant -1.000000e+30 : f32
    %40 = vector.broadcast %cst_19 : f32 to vector<8x8xf32>
    %41 = arith.select %13, %40, %39 : vector<8x8xi1>, vector<8x8xf32>
    %cst_20 = arith.constant dense<0xFF800000> : vector<8xf32>
    %42 = vector.multi_reduction <maximumf>, %41, %cst_20 [1] : vector<8x8xf32> to vector<8xf32>
    %43 = vector.shape_cast %42 : vector<8xf32> to vector<8x1xf32>
    %44 = vector.broadcast %43 : vector<8x1xf32> to vector<8x8xf32>
    %45 = arith.subf %41, %44 : vector<8x8xf32>
    %46 = math.exp %45 : vector<8x8xf32>
    %cst_21 = arith.constant dense<0.000000e+00> : vector<8xf32>
    %47 = vector.multi_reduction <add>, %46, %cst_21 [1] : vector<8x8xf32> to vector<8xf32>
    %48 = vector.shape_cast %47 : vector<8xf32> to vector<8x1xf32>
    %49 = tpu.reciprocal %48 {approx = true} : vector<8x1xf32> -> vector<8x1xf32>
    %50 = vector.broadcast %49 : vector<8x1xf32> to vector<8x8xf32>
    %51 = arith.mulf %46, %50 : vector<8x8xf32>
    %cst_22 = arith.constant dense<0.000000e+00> : vector<8x8xf32>
    %52 = tpu.matmul %51, %38, %cst_22 {dimension_numbers = #tpu.dot_dimension_numbers<[1], [0], [0], [1], [0, 0, 1, 1], [], []>} : vector<8x8xf32>, vector<8x8xf32>, vector<8x8xf32> -> vector<8x8xf32>
    %c0_23 = arith.constant 0 : index
    %c0_24 = arith.constant 0 : index
    %c8 = arith.constant 8 : index
    %53 = vector.load %arg9[%c0_23, %c0_24, %c8] : memref<1x8x32xf32, #tpu.memory_space<vmem>>, vector<1x8x8xf32>
    %54 = vector.shape_cast %53 : vector<1x8x8xf32> to vector<8x8xf32>
    %55 = vector.shape_cast %52 : vector<8x8xf32> to vector<1x8x8xf32>
    tpu.vector_store %arg9[%c0_23, %c0_24, %c8], %55 {strides = array<i32>} : memref<1x8x32xf32, #tpu.memory_space<vmem>>, vector<1x8x8xf32>,
    %56 = vector.extract_strided_slice %7 {offsets = [0, 16], sizes = [8, 8], strides = [1, 1]} : vector<8x32xf32> to vector<8x8xf32>
    %57 = vector.extract_strided_slice %14 {offsets = [0, 16], sizes = [8, 8], strides = [1, 1]} : vector<8x32xf32> to vector<8x8xf32>
    %58 = vector.extract_strided_slice %15 {offsets = [0, 16], sizes = [8, 8], strides = [1, 1]} : vector<8x32xf32> to vector<8x8xf32>
    %cst_25 = arith.constant dense<0.000000e+00> : vector<8x8xf32>
    %59 = tpu.matmul %56, %57, %cst_25 {dimension_numbers = #tpu.dot_dimension_numbers<[1], [1], [0], [0], [0, 0, 1, 0], [], []>} : vector<8x8xf32>, vector<8x8xf32>, vector<8x8xf32> -> vector<8x8xf32>
    %cst_26 = arith.constant -1.000000e+30 : f32
    %60 = vector.broadcast %cst_26 : f32 to vector<8x8xf32>
    %61 = arith.select %13, %60, %59 : vector<8x8xi1>, vector<8x8xf32>
    %cst_27 = arith.constant dense<0xFF800000> : vector<8xf32>
    %62 = vector.multi_reduction <maximumf>, %61, %cst_27 [1] : vector<8x8xf32> to vector<8xf32>
    %63 = vector.shape_cast %62 : vector<8xf32> to vector<8x1xf32>
    %64 = vector.broadcast %63 : vector<8x1xf32> to vector<8x8xf32>
    %65 = arith.subf %61, %64 : vector<8x8xf32>
    %66 = math.exp %65 : vector<8x8xf32>
    %cst_28 = arith.constant dense<0.000000e+00> : vector<8xf32>
    %67 = vector.multi_reduction <add>, %66, %cst_28 [1] : vector<8x8xf32> to vector<8xf32>
    %68 = vector.shape_cast %67 : vector<8xf32> to vector<8x1xf32>
    %69 = tpu.reciprocal %68 {approx = true} : vector<8x1xf32> -> vector<8x1xf32>
    %70 = vector.broadcast %69 : vector<8x1xf32> to vector<8x8xf32>
    %71 = arith.mulf %66, %70 : vector<8x8xf32>
    %cst_29 = arith.constant dense<0.000000e+00> : vector<8x8xf32>
    %72 = tpu.matmul %71, %58, %cst_29 {dimension_numbers = #tpu.dot_dimension_numbers<[1], [0], [0], [1], [0, 0, 1, 1], [], []>} : vector<8x8xf32>, vector<8x8xf32>, vector<8x8xf32> -> vector<8x8xf32>
    %c0_30 = arith.constant 0 : index
    %c0_31 = arith.constant 0 : index
    %c16 = arith.constant 16 : index
    %73 = vector.load %arg9[%c0_30, %c0_31, %c16] : memref<1x8x32xf32, #tpu.memory_space<vmem>>, vector<1x8x8xf32>
    %74 = vector.shape_cast %73 : vector<1x8x8xf32> to vector<8x8xf32>
    %75 = vector.shape_cast %72 : vector<8x8xf32> to vector<1x8x8xf32>
    tpu.vector_store %arg9[%c0_30, %c0_31, %c16], %75 {strides = array<i32>} : memref<1x8x32xf32, #tpu.memory_space<vmem>>, vector<1x8x8xf32>,
    %76 = vector.extract_strided_slice %7 {offsets = [0, 24], sizes = [8, 8], strides = [1, 1]} : vector<8x32xf32> to vector<8x8xf32>
    %77 = vector.extract_strided_slice %14 {offsets = [0, 24], sizes = [8, 8], strides = [1, 1]} : vector<8x32xf32> to vector<8x8xf32>
    %78 = vector.extract_strided_slice %15 {offsets = [0, 24], sizes = [8, 8], strides = [1, 1]} : vector<8x32xf32> to vector<8x8xf32>
    %cst_32 = arith.constant dense<0.000000e+00> : vector<8x8xf32>
    %79 = tpu.matmul %76, %77, %cst_32 {dimension_numbers = #tpu.dot_dimension_numbers<[1], [1], [0], [0], [0, 0, 1, 0], [], []>} : vector<8x8xf32>, vector<8x8xf32>, vector<8x8xf32> -> vector<8x8xf32>
    %cst_33 = arith.constant -1.000000e+30 : f32
    %80 = vector.broadcast %cst_33 : f32 to vector<8x8xf32>
    %81 = arith.select %13, %80, %79 : vector<8x8xi1>, vector<8x8xf32>
    %cst_34 = arith.constant dense<0xFF800000> : vector<8xf32>
    %82 = vector.multi_reduction <maximumf>, %81, %cst_34 [1] : vector<8x8xf32> to vector<8xf32>
    %83 = vector.shape_cast %82 : vector<8xf32> to vector<8x1xf32>
    %84 = vector.broadcast %83 : vector<8x1xf32> to vector<8x8xf32>
    %85 = arith.subf %81, %84 : vector<8x8xf32>
    %86 = math.exp %85 : vector<8x8xf32>
    %cst_35 = arith.constant dense<0.000000e+00> : vector<8xf32>
    %87 = vector.multi_reduction <add>, %86, %cst_35 [1] : vector<8x8xf32> to vector<8xf32>
    %88 = vector.shape_cast %87 : vector<8xf32> to vector<8x1xf32>
    %89 = tpu.reciprocal %88 {approx = true} : vector<8x1xf32> -> vector<8x1xf32>
    %90 = vector.broadcast %89 : vector<8x1xf32> to vector<8x8xf32>
    %91 = arith.mulf %86, %90 : vector<8x8xf32>
    %cst_36 = arith.constant dense<0.000000e+00> : vector<8x8xf32>
    %92 = tpu.matmul %91, %78, %cst_36 {dimension_numbers = #tpu.dot_dimension_numbers<[1], [0], [0], [1], [0, 0, 1, 1], [], []>} : vector<8x8xf32>, vector<8x8xf32>, vector<8x8xf32> -> vector<8x8xf32>
    %c0_37 = arith.constant 0 : index
    %c0_38 = arith.constant 0 : index
    %c24 = arith.constant 24 : index
    %93 = vector.load %arg9[%c0_37, %c0_38, %c24] : memref<1x8x32xf32, #tpu.memory_space<vmem>>, vector<1x8x8xf32>
    %94 = vector.shape_cast %93 : vector<1x8x8xf32> to vector<8x8xf32>
    %95 = vector.shape_cast %92 : vector<8x8xf32> to vector<1x8x8xf32>
    tpu.vector_store %arg9[%c0_37, %c0_38, %c24], %95 {strides = array<i32>} : memref<1x8x32xf32, #tpu.memory_space<vmem>>, vector<1x8x8xf32>,
    return
  }
  func.func @transform_0(%arg0: i32, %arg1: i32, %arg2: i32) -> (i32, i32, i32) {
    %c0_i32 = arith.constant 0 : i32
    %c0_i32_0 = arith.constant 0 : i32
    return %arg0, %arg2, %c0_i32 : i32, i32, i32
  }
  func.func @transform_1(%arg0: i32, %arg1: i32, %arg2: i32) -> (i32, i32, i32) {
    %c0_i32 = arith.constant 0 : i32
    %c0_i32_0 = arith.constant 0 : i32
    %c0_i32_1 = arith.constant 0 : i32
    return %arg0, %c0_i32, %c0_i32_0 : i32, i32, i32
  }
  func.func @transform_2(%arg0: i32, %arg1: i32, %arg2: i32) -> (i32, i32, i32) {
    %c0_i32 = arith.constant 0 : i32
    %c0_i32_0 = arith.constant 0 : i32
    %c0_i32_1 = arith.constant 0 : i32
    return %arg0, %c0_i32, %c0_i32_0 : i32, i32, i32
  }
  func.func @transform_3(%arg0: i32, %arg1: i32, %arg2: i32) -> (i32, i32, i32) {
    %c0_i32 = arith.constant 0 : i32
    %c0_i32_0 = arith.constant 0 : i32
    %c0_i32_1 = arith.constant 0 : i32
    return %arg1, %c0_i32, %c0_i32_0 : i32, i32, i32
  }
  func.func @transform_4(%arg0: i32, %arg1: i32, %arg2: i32) -> (i32, i32, i32) {
    %c0_i32 = arith.constant 0 : i32
    %c0_i32_0 = arith.constant 0 : i32
    %c0_i32_1 = arith.constant 0 : i32
    return %arg1, %c0_i32, %c0_i32_0 : i32, i32, i32
  }
  func.func @transform_5(%arg0: i32, %arg1: i32, %arg2: i32) -> (i32, i32, i32) {
    %c0_i32 = arith.constant 0 : i32
    %c0_i32_0 = arith.constant 0 : i32
    %c0_i32_1 = arith.constant 0 : i32
    return %arg1, %c0_i32, %c0_i32_0 : i32, i32, i32
  }
  func.func @transform_6(%arg0: i32, %arg1: i32, %arg2: i32) -> (i32, i32, i32) {
    %c0_i32 = arith.constant 0 : i32
    return %arg0, %arg2, %arg1 : i32, i32, i32
  }
}

</mosaic_0001>

<llo_original>
// kernel: tpu_custom_call.1
$region0: #{tpu_custom_call.1}
  #allocation0 [shape = 'u32[]', space=smem, size = 0x4, offset = 0x4, fixed_abs, tag = 'smem constant byte address 0x4 - core index']
  #allocation1 [shape = 'u32[144,128]{1,0:T(1,128)}', space=vmem, size = 0x12000, scoped, tag = 'internal scratch']
  #allocation2 [shape = 'f32[8,32]{1,0:T(8,128)}', space=vmem, size = 0x1000, scoped, tag = 'scratch operand']
  #allocation3 [shape = 'f32[8,32]{1,0:T(8,128)}', space=vmem, size = 0x1000, scoped, tag = 'scratch operand']
  %s0 = inlined_call_operand.hbm [shape: f32[2,8,32], index: 0, kind: input, shape index: {}]
  %s1 = inlined_call_operand.hbm [shape: f32[2,8,32], index: 1, kind: input, shape index: {}]
  %s2 = inlined_call_operand.hbm [shape: f32[2,8,32], index: 2, kind: input, shape index: {}]
  %s3 = inlined_call_operand.hbm [shape: f32[1,32,32], index: 3, kind: input, shape index: {}]
  %s4 = inlined_call_operand.hbm [shape: f32[1,32,32], index: 4, kind: input, shape index: {}]
  %s5 = inlined_call_operand.hbm [shape: f32[1,32,32], index: 5, kind: input, shape index: {}]
  %s6 = inlined_call_operand.hbm [shape: f32[2,8,32], index: 6, kind: output, shape index: {}]
  %s7 = sld [smem:[#allocation0]]
  $region85: #{tpu_custom_call.1} parent=0
    _
  %s9 = ssub.s32 1, %s7
  %s10 = scalar_select 0, %s9, %s7
  $region1: #{tpu_custom_call.1} parent=0
    #allocation4 [shape = 'u8[8192]{0}', space=vmem, size = 0x2000, scoped, tag = 'input window, operand 0']
    #allocation5 [shape = 's32[2]{0}', space=sflag, size = 0x8, scoped, tag = 'scoped memory for tpu_custom_call.1']
    #allocation6 [shape = 's32[2]{0}', space=sflag, size = 0x8, scoped, tag = 'scoped memory for tpu_custom_call.1']
    #allocation7 [shape = 'u8[8192]{0}', space=vmem, size = 0x2000, scoped, tag = 'input window, operand 1']
    #allocation8 [shape = 's32[2]{0}', space=sflag, size = 0x8, scoped, tag = 'scoped memory for tpu_custom_call.1']
    #allocation9 [shape = 'u8[8192]{0}', space=vmem, size = 0x2000, scoped, tag = 'input window, operand 2']
    #allocation10 [shape = 'u8[16384]{0}', space=vmem, size = 0x4000, scoped, tag = 'input window, operand 3, single buffered']
    #allocation11 [shape = 's32[1]{0}', space=sflag, size = 0x4, scoped, tag = 'scoped memory for tpu_custom_call.1']
    #allocation12 [shape = 'u8[16384]{0}', space=vmem, size = 0x4000, scoped, tag = 'input window, operand 4, single buffered']
    #allocation13 [shape = 'u8[16384]{0}', space=vmem, size = 0x4000, scoped, tag = 'input window, operand 5, single buffered']
    #allocation14 [shape = 's32[1]{0}', space=sflag, size = 0x4, scoped, tag = 'scoped memory for tpu_custom_call.1']
    #allocation15 [shape = 'u8[8192]{0}', space=vmem, size = 0x2000, scoped, tag = 'output window, operand 0']
    %11 = vsyncpa [#allocation5], 0
    %s12 = scalar_lea.sflag [#allocation5], 1
    %13 = vsyncpa %s12, 0
    %14 = vsyncpa [#allocation8], 0
    %s15 = scalar_lea.sflag [#allocation8], 1
    %16 = vsyncpa %s15, 0
    %17 = vsyncpa [#allocation11], 0
    %18 = vsyncpa [#allocation14], 0
    %19 = vsyncpa [#allocation6], 0
    %s20 = scalar_lea.sflag [#allocation6], 1
    %21 = vsyncpa %s20, 0
    loop: start=0, step=1, limit=4
    $region2: #{tpu_custom_call.1} parent=1 // loop_pre_header
      _
    $region3: #{tpu_custom_call.1} parent=1 // loop_header
      %s23 = sphi 0, %s27
      %p24 = scmp.ge.s32.totalorder %s23, 4
      %s30 = sphi 0, %s49
      %s31 = sphi 0, %s45
      %s32 = sphi 0, %s41
      %s33 = sphi 0, %s30
      %s34 = sphi 0, %s31
      %s35 = sphi 0, %s32
      %s36 = sphi 0, %s33
      %s37 = sphi 0, %s34
      %s38 = sphi 0, %s35
      %s54 = sphi 0, %s56
      %s57 = sphi 0, %s54
      %s58 = sphi 0, %s57
      %s74 = sphi 0, %s58
      %s80 = sphi 0, %s82
      %s83 = sphi 0, %s80
      %s84 = sphi 0, %s83
      %s100 = sphi 0, %s84
      %s106 = sphi 0, %s108
      %s109 = sphi 0, %s106
      %s110 = sphi 0, %s109
      %s126 = sphi 0, %s110
      %s132 = sphi 0, %s134
      %s135 = sphi 0, %s132
      %s136 = sphi 0, %s135
      %s152 = sphi 0, %s136
      %s158 = sphi 0, %s160
      %s161 = sphi 0, %s158
      %s162 = sphi 0, %s161
      %s178 = sphi 0, %s162
      %s184 = sphi 0, %s186
      %s187 = sphi 0, %s184
      %s188 = sphi 0, %s187
      %s204 = sphi 0, %s188
      %s214 = sphi 0, %s216
      %s217 = sphi 0, %s214
      %s218 = sphi 0, %s217
      %s234 = sphi 0, %s218
    $region4: #{tpu_custom_call.1} parent=1 // loop_header_branch
      %26 = sbr.rel (%p24) target = $region8
    $region5: #{tpu_custom_call.1} parent=1 // loop_body
      %s28 = ssub.s32 %s23, 1
      %s29 = ssub.s32 %s23, 2
      %s39 = sadd.s32 1, %s32
      %p40 = scmp.ge.s32.totalorder %s39, 1
      %s41 = scalar_select %p40, 0, %s39
      %s42 = sadd.s32 1, %s31
      %s43 = scalar_select %p40, %s42, %s31
      %p44 = scmp.ge.s32.totalorder %s43, 1
      %s45 = scalar_select %p44, 0, %s43
      %s46 = sadd.s32 1, %s30
      %s47 = scalar_select %p44, %s46, %s30
      %p48 = scmp.ge.s32.totalorder %s47, 2
      %s49 = scalar_select %p48, 0, %s47
      %s50 = ssub.s32 %s30, %s49
      %s51 = ssub.s32 %s32, %s41
      %s52 = sor.u32 %s50, %s51
      %p53 = scmp.eq.s32.totalorder %s52, 0
      %s55 = sadd.s32 %s54, 1
      %s56 = scalar_select %p53, %s54, %s55
      %p59 = pneg %p53
      %p60 = scmp.eq.s32.totalorder %s23, 1
      %p61 = por %p59, %p60
      %p62 = scmp.ne.s32.totalorder %s54, %s57
      %p63 = scmp.eq.s32.totalorder %s23, 0
      %p64 = por %p62, %p63
      %p65 = scmp.ne.s32.totalorder %s54, %s57
      %p66 = scmp.eq.s32.totalorder %s28, 1
      %p67 = por %p65, %p66
      %p68 = scmp.ne.s32.totalorder %s57, %s58
      %p69 = scmp.eq.s32.totalorder %s28, 0
      %p70 = por %p68, %p69
      %p71 = scmp.ne.s32.totalorder %s57, %s58
      %p72 = scmp.eq.s32.totalorder %s29, 1
      %p73 = por %p71, %p72
      %p75 = scmp.ne.s32.totalorder %s58, %s74
      %p76 = scmp.eq.s32.totalorder %s29, 0
      %p77 = por %p75, %p76
      %s78 = ssub.s32 %s30, %s49
      %p79 = scmp.eq.s32.totalorder %s78, 0
      %s81 = sadd.s32 %s80, 1
      %s82 = scalar_select %p79, %s80, %s81
      %p85 = pneg %p79
      %p86 = scmp.eq.s32.totalorder %s23, 1
      %p87 = por %p85, %p86
      %p88 = scmp.ne.s32.totalorder %s80, %s83
      %p89 = scmp.eq.s32.totalorder %s23, 0
      %p90 = por %p88, %p89
      %p91 = scmp.ne.s32.totalorder %s80, %s83
      %p92 = scmp.eq.s32.totalorder %s28, 1
      %p93 = por %p91, %p92
      %p94 = scmp.ne.s32.totalorder %s83, %s84
      %p95 = scmp.eq.s32.totalorder %s28, 0
      %p96 = por %p94, %p95
      %p97 = scmp.ne.s32.totalorder %s83, %s84
      %p98 = scmp.eq.s32.totalorder %s29, 1
      %p99 = por %p97, %p98
      %p101 = scmp.ne.s32.totalorder %s84, %s100
      %p102 = scmp.eq.s32.totalorder %s29, 0
      %p103 = por %p101, %p102
      %s104 = ssub.s32 %s30, %s49
      %p105 = scmp.eq.s32.totalorder %s104, 0
      %s107 = sadd.s32 %s106, 1
      %s108 = scalar_select %p105, %s106, %s107
      %p111 = pneg %p105
      %p112 = scmp.eq.s32.totalorder %s23, 1
      %p113 = por %p111, %p112
      %p114 = scmp.ne.s32.totalorder %s106, %s109
      %p115 = scmp.eq.s32.totalorder %s23, 0
      %p116 = por %p114, %p115
      %p117 = scmp.ne.s32.totalorder %s106, %s109
      %p118 = scmp.eq.s32.totalorder %s28, 1
      %p119 = por %p117, %p118
      %p120 = scmp.ne.s32.totalorder %s109, %s110
      %p121 = scmp.eq.s32.totalorder %s28, 0
      %p122 = por %p120, %p121
      %p123 = scmp.ne.s32.totalorder %s109, %s110
      %p124 = scmp.eq.s32.totalorder %s29, 1
      %p125 = por %p123, %p124
      %p127 = scmp.ne.s32.totalorder %s110, %s126
      %p128 = scmp.eq.s32.totalorder %s29, 0
      %p129 = por %p127, %p128
      %s130 = ssub.s32 %s31, %s45
      %p131 = scmp.eq.s32.totalorder %s130, 0
      %s133 = sadd.s32 %s132, 1
      %s134 = scalar_select %p131, %s132, %s133
      %p137 = pneg %p131
      %p138 = scmp.eq.s32.totalorder %s23, 1
      %p139 = por %p137, %p138
      %p140 = scmp.ne.s32.totalorder %s132, %s135
      %p141 = scmp.eq.s32.totalorder %s23, 0
      %p142 = por %p140, %p141
      %p143 = scmp.ne.s32.totalorder %s132, %s135
      %p144 = scmp.eq.s32.totalorder %s28, 1
      %p145 = por %p143, %p144
      %p146 = scmp.ne.s32.totalorder %s135, %s136
      %p147 = scmp.eq.s32.totalorder %s28, 0
      %p148 = por %p146, %p147
      %p149 = scmp.ne.s32.totalorder %s135, %s136
      %p150 = scmp.eq.s32.totalorder %s29, 1
      %p151 = por %p149, %p150
      %p153 = scmp.ne.s32.totalorder %s136, %s152
      %p154 = scmp.eq.s32.totalorder %s29, 0
      %p155 = por %p153, %p154
      %s156 = ssub.s32 %s31, %s45
      %p157 = scmp.eq.s32.totalorder %s156, 0
      %s159 = sadd.s32 %s158, 1
      %s160 = scalar_select %p157, %s158, %s159
      %p163 = pneg %p157
      %p164 = scmp.eq.s32.totalorder %s23, 1
      %p165 = por %p163, %p164
      %p166 = scmp.ne.s32.totalorder %s158, %s161
      %p167 = scmp.eq.s32.totalorder %s23, 0
      %p168 = por %p166, %p167
      %p169 = scmp.ne.s32.totalorder %s158, %s161
      %p170 = scmp.eq.s32.totalorder %s28, 1
      %p171 = por %p169, %p170
      %p172 = scmp.ne.s32.totalorder %s161, %s162
      %p173 = scmp.eq.s32.totalorder %s28, 0
      %p174 = por %p172, %p173
      %p175 = scmp.ne.s32.totalorder %s161, %s162
      %p176 = scmp.eq.s32.totalorder %s29, 1
      %p177 = por %p175, %p176
      %p179 = scmp.ne.s32.totalorder %s162, %s178
      %p180 = scmp.eq.s32.totalorder %s29, 0
      %p181 = por %p179, %p180
      %s182 = ssub.s32 %s31, %s45
      %p183 = scmp.eq.s32.totalorder %s182, 0
      %s185 = sadd.s32 %s184, 1
      %s186 = scalar_select %p183, %s184, %s185
      %p189 = pneg %p183
      %p190 = scmp.eq.s32.totalorder %s23, 1
      %p191 = por %p189, %p190
      %p192 = scmp.ne.s32.totalorder %s184, %s187
      %p193 = scmp.eq.s32.totalorder %s23, 0
      %p194 = por %p192, %p193
      %p195 = scmp.ne.s32.totalorder %s184, %s187
      %p196 = scmp.eq.s32.totalorder %s28, 1
      %p197 = por %p195, %p196
      %p198 = scmp.ne.s32.totalorder %s187, %s188
      %p199 = scmp.eq.s32.totalorder %s28, 0
      %p200 = por %p198, %p199
      %p201 = scmp.ne.s32.totalorder %s187, %s188
      %p202 = scmp.eq.s32.totalorder %s29, 1
      %p203 = por %p201, %p202
      %p205 = scmp.ne.s32.totalorder %s188, %s204
      %p206 = scmp.eq.s32.totalorder %s29, 0
      %p207 = por %p205, %p206
      %s208 = ssub.s32 %s30, %s49
      %s209 = ssub.s32 %s32, %s41
      %s210 = sor.u32 %s208, %s209
      %s211 = ssub.s32 %s31, %s45
      %s212 = sor.u32 %s210, %s211
      %p213 = scmp.eq.s32.totalorder %s212, 0
      %s215 = sadd.s32 %s214, 1
      %s216 = scalar_select %p213, %s214, %s215
      %p219 = pneg %p213
      %p220 = scmp.eq.s32.totalorder %s23, 1
      %p221 = por %p219, %p220
      %p222 = scmp.ne.s32.totalorder %s214, %s217
      %p223 = scmp.eq.s32.totalorder %s23, 0
      %p224 = por %p222, %p223
      %p225 = scmp.ne.s32.totalorder %s214, %s217
      %p226 = scmp.eq.s32.totalorder %s28, 1
      %p227 = por %p225, %p226
      %p228 = scmp.ne.s32.totalorder %s217, %s218
      %p229 = scmp.eq.s32.totalorder %s28, 0
      %p230 = por %p228, %p229
      %p231 = scmp.ne.s32.totalorder %s217, %s218
      %p232 = scmp.eq.s32.totalorder %s29, 1
      %p233 = por %p231, %p232
      %p235 = scmp.ne.s32.totalorder %s218, %s234
      %p236 = scmp.eq.s32.totalorder %s29, 0
      %p237 = por %p235, %p236
      %p238 = scmp.le.s32.totalorder 1, %s23
      %p239 = scmp.lt.s32.totalorder %s23, 3
      %p240 = pnand %p238, %p239
      %p241 = pneg %p240
      // Predicated region
      $region9: #{tpu_custom_call.1} parent=5 // pred_check
        _
      $region10: #{tpu_custom_call.1} parent=5 // pred_check_branch
        %243 = sbr.rel (%p240) target = $region12
      $region11: #{tpu_custom_call.1} parent=5 // pred_region
        %s244 = ssub.s32 %s23, 1
        // Predicated region
        $region13: #{tpu_custom_call.1} parent=11 // pred_check
          %p245 = pneg %p148
        $region14: #{tpu_custom_call.1} parent=11 // pred_check_branch
          %247 = sbr.rel (%p245) target = $region16
        $region15: #{tpu_custom_call.1} parent=11 // pred_region
          %s249 = ssub.s32 512, 512
          %250 = vsyncadd [#allocation11], %s249
          %s251 = smul.addr %s34, 4
          %s252 = smul.addr %s251, 128
          %s253 = scalar_lea.hbm %s3, %s252
          %s254 = sshll.u32 [#allocation10], 4
          %s255 = int_to_ptr.vmem [resolvable:$true] %s254
          %260 = dma.hbm_to_vmem [thread:$0]  %s253, 512, %s255, [#allocation11], 128, 128, 8
        $region16: #{tpu_custom_call.1} parent=11 // pred_fallthru
          _
        // Predicated region
        $region17: #{tpu_custom_call.1} parent=11 // pred_check
          %p261 = pneg %p174
        $region18: #{tpu_custom_call.1} parent=11 // pred_check_branch
          %263 = sbr.rel (%p261) target = $region20
        $region19: #{tpu_custom_call.1} parent=11 // pred_region
          %s265 = ssub.s32 512, 512
          %266 = vsyncadd [#allocation11], %s265
          %s267 = smul.addr %s34, 4
          %s268 = smul.addr %s267, 128
          %s269 = scalar_lea.hbm %s4, %s268
          %s270 = sshll.u32 [#allocation12], 4
          %s271 = int_to_ptr.vmem [resolvable:$true] %s270
          %276 = dma.hbm_to_vmem [thread:$0]  %s269, 512, %s271, [#allocation11], 128, 128, 8
        $region20: #{tpu_custom_call.1} parent=11 // pred_fallthru
          _
        // Predicated region
        $region21: #{tpu_custom_call.1} parent=11 // pred_check
          %p277 = pneg %p200
        $region22: #{tpu_custom_call.1} parent=11 // pred_check_branch
          %279 = sbr.rel (%p277) target = $region24
        $region23: #{tpu_custom_call.1} parent=11 // pred_region
          %s281 = ssub.s32 512, 512
          %282 = vsyncadd [#allocation14], %s281
          %s283 = smul.addr %s34, 4
          %s284 = smul.addr %s283, 128
          %s285 = scalar_lea.hbm %s5, %s284
          %s286 = sshll.u32 [#allocation13], 4
          %s287 = int_to_ptr.vmem [resolvable:$true] %s286
          %292 = dma.hbm_to_vmem [thread:$0]  %s285, 512, %s287, [#allocation14], 128, 128, 8
        $region24: #{tpu_custom_call.1} parent=11 // pred_fallthru
          _
      $region12: #{tpu_custom_call.1} parent=5 // pred_fallthru
        _
      %p293 = scmp.lt.s32.totalorder %s23, 2
      // Predicated region
      $region25: #{tpu_custom_call.1} parent=5 // pred_check
        %p294 = pneg %p293
      $region26: #{tpu_custom_call.1} parent=5 // pred_check_branch
        %296 = sbr.rel (%p294) target = $region28
      $region27: #{tpu_custom_call.1} parent=5 // pred_region
        // Predicated region
        $region29: #{tpu_custom_call.1} parent=27 // pred_check
          %p297 = pneg %p64
        $region30: #{tpu_custom_call.1} parent=27 // pred_check_branch
          %299 = sbr.rel (%p297) target = $region32
        $region31: #{tpu_custom_call.1} parent=27 // pred_region
          %s300 = sand.u32 %s54, 1
          %s301 = scalar_lea.sflag [#allocation5], %s300
          %s302 = sand.u32 %s54, 1
          %s303 = smul.addr %s302, 8
          %s304 = scalar_lea.vmem [#allocation4], %s303
          %s306 = ssub.s32 128, 128
          %307 = vsyncadd %s301, %s306
          %s308 = sadd.s32 %s32, %s30
          %s309 = smul.addr %s308, 128
          %s310 = scalar_lea.hbm %s0, %s309
          %s312 = sshll.u32 %s304, 4
          %s313 = int_to_ptr.vmem [resolvable:$true] %s312
          %315 = dma.hbm_to_vmem [thread:$0]  %s310, 128, %s313, %s301
        $region32: #{tpu_custom_call.1} parent=27 // pred_fallthru
          _
        // Predicated region
        $region33: #{tpu_custom_call.1} parent=27 // pred_check
          %p316 = pneg %p90
        $region34: #{tpu_custom_call.1} parent=27 // pred_check_branch
          %318 = sbr.rel (%p316) target = $region36
        $region35: #{tpu_custom_call.1} parent=27 // pred_region
          %s319 = sand.u32 %s23, 1
          %s320 = scalar_lea.sflag [#allocation8], %s319
          %s321 = sand.u32 %s80, 1
          %s322 = smul.addr %s321, 8
          %s323 = scalar_lea.vmem [#allocation7], %s322
          %s325 = ssub.s32 128, 128
          %326 = vsyncadd %s320, %s325
          %s327 = smul.addr %s30, 128
          %s328 = scalar_lea.hbm %s1, %s327
          %s330 = sshll.u32 %s323, 4
          %s331 = int_to_ptr.vmem [resolvable:$true] %s330
          %333 = dma.hbm_to_vmem [thread:$0]  %s328, 128, %s331, %s320
        $region36: #{tpu_custom_call.1} parent=27 // pred_fallthru
          _
        // Predicated region
        $region37: #{tpu_custom_call.1} parent=27 // pred_check
          %p334 = pneg %p116
        $region38: #{tpu_custom_call.1} parent=27 // pred_check_branch
          %336 = sbr.rel (%p334) target = $region40
        $region39: #{tpu_custom_call.1} parent=27 // pred_region
          %s337 = sand.u32 %s23, 1
          %s338 = scalar_lea.sflag [#allocation8], %s337
          %s339 = sand.u32 %s106, 1
          %s340 = smul.addr %s339, 8
          %s341 = scalar_lea.vmem [#allocation9], %s340
          %s343 = ssub.s32 128, 128
          %344 = vsyncadd %s338, %s343
          %s345 = smul.addr %s30, 128
          %s346 = scalar_lea.hbm %s2, %s345
          %s348 = sshll.u32 %s341, 4
          %s349 = int_to_ptr.vmem [resolvable:$true] %s348
          %351 = dma.hbm_to_vmem [thread:$0]  %s346, 128, %s349, %s338
        $region40: #{tpu_custom_call.1} parent=27 // pred_fallthru
          _
      $region28: #{tpu_custom_call.1} parent=5 // pred_fallthru
        _
      %p352 = scmp.le.s32.totalorder 1, %s23
      %p353 = scmp.lt.s32.totalorder %s23, 3
      %p354 = pnand %p352, %p353
      %p355 = pneg %p354
      // Predicated region
      $region41: #{tpu_custom_call.1} parent=5 // pred_check
        _
      $region42: #{tpu_custom_call.1} parent=5 // pred_check_branch
        %357 = sbr.rel (%p354) target = $region44
      $region43: #{tpu_custom_call.1} parent=5 // pred_region
        %s358 = ssub.s32 %s23, 1
        %s359 = sand.u32 %s57, 1
        %s360 = scalar_lea.sflag [#allocation5], %s359
        %s361 = sand.u32 %s57, 1
        %s362 = smul.addr %s361, 8
        %s363 = scalar_lea.vmem [#allocation4], %s362
        // Predicated region
        $region45: #{tpu_custom_call.1} parent=43 // pred_check
          %p364 = pneg %p70
        $region46: #{tpu_custom_call.1} parent=43 // pred_check_branch
          %366 = sbr.rel (%p364) target = $region48
        $region47: #{tpu_custom_call.1} parent=43 // pred_region
          %367 = dma.done %s360, 128
        $region48: #{tpu_custom_call.1} parent=43 // pred_fallthru
          _
        %s368 = sand.u32 %s28, 1
        %s369 = scalar_lea.sflag [#allocation8], %s368
        %s370 = sand.u32 %s83, 1
        %s371 = smul.addr %s370, 8
        %s372 = scalar_lea.vmem [#allocation7], %s371
        // Predicated region
        $region49: #{tpu_custom_call.1} parent=43 // pred_check
          %p373 = pneg %p96
        $region50: #{tpu_custom_call.1} parent=43 // pred_check_branch
          %375 = sbr.rel (%p373) target = $region52
        $region51: #{tpu_custom_call.1} parent=43 // pred_region
          %376 = dma.done %s369, 128
        $region52: #{tpu_custom_call.1} parent=43 // pred_fallthru
          _
        %s377 = sand.u32 %s28, 1
        %s378 = scalar_lea.sflag [#allocation8], %s377
        %s379 = sand.u32 %s109, 1
        %s380 = smul.addr %s379, 8
        %s381 = scalar_lea.vmem [#allocation9], %s380
        // Predicated region
        $region53: #{tpu_custom_call.1} parent=43 // pred_check
          %p382 = pneg %p122
        $region54: #{tpu_custom_call.1} parent=43 // pred_check_branch
          %384 = sbr.rel (%p382) target = $region56
        $region55: #{tpu_custom_call.1} parent=43 // pred_region
          %385 = dma.done %s378, 128
        $region56: #{tpu_custom_call.1} parent=43 // pred_fallthru
          _
        // Predicated region
        $region57: #{tpu_custom_call.1} parent=43 // pred_check
          %p386 = pneg %p148
        $region58: #{tpu_custom_call.1} parent=43 // pred_check_branch
          %388 = sbr.rel (%p386) target = $region60
        $region59: #{tpu_custom_call.1} parent=43 // pred_region
          %389 = dma.done [#allocation11], 512
        $region60: #{tpu_custom_call.1} parent=43 // pred_fallthru
          _
        // Predicated region
        $region61: #{tpu_custom_call.1} parent=43 // pred_check
          %p390 = pneg %p174
        $region62: #{tpu_custom_call.1} parent=43 // pred_check_branch
          %392 = sbr.rel (%p390) target = $region64
        $region63: #{tpu_custom_call.1} parent=43 // pred_region
          %393 = dma.done [#allocation11], 512
        $region64: #{tpu_custom_call.1} parent=43 // pred_fallthru
          _
        // Predicated region
        $region65: #{tpu_custom_call.1} parent=43 // pred_check
          %p394 = pneg %p200
        $region66: #{tpu_custom_call.1} parent=43 // pred_check_branch
          %396 = sbr.rel (%p394) target = $region68
        $region67: #{tpu_custom_call.1} parent=43 // pred_region
          %397 = dma.done [#allocation14], 512
        $region68: #{tpu_custom_call.1} parent=43 // pred_fallthru
          _
        %s398 = sand.u32 %s57, 1
        %s399 = scalar_lea.sflag [#allocation5], %s398
        %s400 = sand.u32 %s57, 1
        %s401 = smul.addr %s400, 8
        %s402 = scalar_lea.vmem [#allocation4], %s401
        %p403 = pneg %p70
        %p404 = pneg %p67
        %s405 = sand.u32 %s28, 1
        %s406 = scalar_lea.sflag [#allocation8], %s405
        %s407 = sand.u32 %s83, 1
        %s408 = smul.addr %s407, 8
        %s409 = scalar_lea.vmem [#allocation7], %s408
        %p410 = pneg %p96
        %p411 = pneg %p93
        %s412 = sand.u32 %s28, 1
        %s413 = scalar_lea.sflag [#allocation8], %s412
        %s414 = sand.u32 %s109, 1
        %s415 = smul.addr %s414, 8
        %s416 = scalar_lea.vmem [#allocation9], %s415
        %p417 = pneg %p122
        %p418 = pneg %p119
        %p419 = pneg %p148
        %p420 = pneg %p145
        %p421 = pneg %p174
        %p422 = pneg %p171
        %p423 = pneg %p200
        %p424 = pneg %p197
        %p425 = pneg %p230
        %p426 = pneg %p227
        %s427 = sand.u32 %s217, 1
        %s428 = scalar_lea.sflag [#allocation6], %s427
        %s429 = sand.u32 %s217, 1
        %s430 = smul.addr %s429, 8
        %s431 = scalar_lea.vmem [#allocation15], %s430
        %p432 = scmp.eq.s32.totalorder %s35, 0
        // Predicated region
        $region69: #{tpu_custom_call.1} parent=43 // pred_check
          %p433 = pneg %p432
        $region70: #{tpu_custom_call.1} parent=43 // pred_check_branch
          %435 = sbr.rel (%p433) target = $region72
        $region71: #{tpu_custom_call.1} parent=43 // pred_region
          %v436 = vld [vmem:[%s372] sm:$0xff]
          %v437 = vld [vmem:[#allocation12] sm:$0xff]
          %v438 = vld [vmem:[#allocation12 + $0x8] sm:$0xff]
          %v439 = vld [vmem:[#allocation12 + $0x10] sm:$0xff]
          %v440 = vld [vmem:[#allocation12 + $0x18] sm:$0xff]
          %vm441 = vcmask 261120
          %v443 = vsel %vm441, %v436, 0
          %445 = vmatprep.subr.mxu0 0.0
          %446 = vmatpush1.msra.mxu0 0.0
          %447 = vmatprep.subr.mxu0 0.0
          %448 = vmatpush1.msra.mxu0 0.0
          %449 = vmatprep.subr.mxu0 0.0
          %450 = vmatpush1.msra.mxu0 0.0
          %451 = vmatprep.subr.mxu0 0.0
          %452 = vmatpush1.msra.mxu0 0.0
          %453 = vmatprep.subr.mxu0 0.0
          %454 = vmatpush1.msra.mxu0 0.0
          %455 = vmatprep.subr.mxu0 0.0
          %456 = vmatpush1.msra.mxu0 0.0
          %457 = vmatprep.subr.mxu0 0.0
          %458 = vmatpush1.msra.mxu0 0.0
          %459 = vmatprep.subr.mxu0 0.0
          %460 = vmatpush1.msra.mxu0 0.0
          %461 = vmatprep.subr.mxu0 0.0
          %462 = vmatpush1.msra.mxu0 0.0
          %463 = vmatprep.subr.mxu0 0.0
          %464 = vmatpush1.msra.mxu0 0.0
          %465 = vmatprep.subr.mxu0 0.0
          %466 = vmatpush1.msra.mxu0 0.0
          %467 = vmatprep.subr.mxu0 0.0
          %468 = vmatpush1.msra.mxu0 0.0
          %469 = vmatprep.subr.mxu0 0.0
          %470 = vmatpush1.msra.mxu0 %v440
          %471 = vmatprep.subr.mxu0 0.0
          %472 = vmatpush1.msra.mxu0 %v439
          %473 = vmatprep.subr.mxu0 0.0
          %474 = vmatpush1.msra.mxu0 %v438
          %475 = vmatprep.subr.mxu0 0.0
          %476 = vmatpush1.msra.mxu0 %v437
          %477 = vmatprep.subr.mxu0 0.0
          %478 = vmatpush2.msra.mxu0 0.0
          %479 = vmatprep.subr.mxu0 0.0
          %480 = vmatpush2.msra.mxu0 0.0
          %481 = vmatprep.subr.mxu0 0.0
          %482 = vmatpush2.msra.mxu0 0.0
          %483 = vmatprep.subr.mxu0 0.0
          %484 = vmatpush2.msra.mxu0 0.0
          %485 = vmatprep.subr.mxu0 0.0
          %486 = vmatpush2.msra.mxu0 0.0
          %487 = vmatprep.subr.mxu0 0.0
          %488 = vmatpush2.msra.mxu0 0.0
          %489 = vmatprep.subr.mxu0 0.0
          %490 = vmatpush2.msra.mxu0 0.0
          %491 = vmatprep.subr.mxu0 0.0
          %492 = vmatpush2.msra.mxu0 0.0
          %493 = vmatprep.subr.mxu0 0.0
          %494 = vmatpush2.msra.mxu0 0.0
          %495 = vmatprep.subr.mxu0 0.0
          %496 = vmatpush2.msra.mxu0 0.0
          %497 = vmatprep.subr.mxu0 0.0
          %498 = vmatpush2.msra.mxu0 0.0
          %499 = vmatprep.subr.mxu0 0.0
          %500 = vmatpush2.msra.mxu0 0.0
          %501 = vmatprep.subr.mxu0 0.0
          %502 = vmatpush2.msra.mxu0 0.0
          %503 = vmatprep.subr.mxu0 0.0
          %504 = vmatpush2.msra.mxu0 0.0
          %505 = vmatprep.subr.mxu0 0.0
          %506 = vmatpush2.msra.mxu0 0.0
          %507 = vmatprep.subr.mxu0 0.0
          %508 = vmatpush2.msra.mxu0 0.0
          %509 = vmatprep.mubr.f32.mxu0 0.0
          %510 = vmatmul.mubr.f32.gmra.mxu0 %v443
          %v511 = vpop.f32.mrf.mxu0
          %v512 = vadd.f32 0.0, %v511
          %v513 = vpop.f32.mrf.mxu0
          %514 = vdwg.mxu0
          %515 = vst.msk [vmem:[#allocation2] sm:$0xff] %vm441, %v512
          %v516 = vld [vmem:[%s381] sm:$0xff]
          %v517 = vld [vmem:[#allocation13] sm:$0xff]
          %v518 = vld [vmem:[#allocation13 + $0x8] sm:$0xff]
          %v519 = vld [vmem:[#allocation13 + $0x10] sm:$0xff]
          %v520 = vld [vmem:[#allocation13 + $0x18] sm:$0xff]
          %v522 = vsel %vm441, %v516, 0
          %524 = vmatprep.subr.mxu0 0.0
          %525 = vmatpush1.msra.mxu0 0.0
          %526 = vmatprep.subr.mxu0 0.0
          %527 = vmatpush1.msra.mxu0 0.0
          %528 = vmatprep.subr.mxu0 0.0
          %529 = vmatpush1.msra.mxu0 0.0
          %530 = vmatprep.subr.mxu0 0.0
          %531 = vmatpush1.msra.mxu0 0.0
          %532 = vmatprep.subr.mxu0 0.0
          %533 = vmatpush1.msra.mxu0 0.0
          %534 = vmatprep.subr.mxu0 0.0
          %535 = vmatpush1.msra.mxu0 0.0
          %536 = vmatprep.subr.mxu0 0.0
          %537 = vmatpush1.msra.mxu0 0.0
          %538 = vmatprep.subr.mxu0 0.0
          %539 = vmatpush1.msra.mxu0 0.0
          %540 = vmatprep.subr.mxu0 0.0
          %541 = vmatpush1.msra.mxu0 0.0
          %542 = vmatprep.subr.mxu0 0.0
          %543 = vmatpush1.msra.mxu0 0.0
          %544 = vmatprep.subr.mxu0 0.0
          %545 = vmatpush1.msra.mxu0 0.0
          %546 = vmatprep.subr.mxu0 0.0
          %547 = vmatpush1.msra.mxu0 0.0
          %548 = vmatprep.subr.mxu0 0.0
          %549 = vmatpush1.msra.mxu0 %v520
          %550 = vmatprep.subr.mxu0 0.0
          %551 = vmatpush1.msra.mxu0 %v519
          %552 = vmatprep.subr.mxu0 0.0
          %553 = vmatpush1.msra.mxu0 %v518
          %554 = vmatprep.subr.mxu0 0.0
          %555 = vmatpush1.msra.mxu0 %v517
          %556 = vmatprep.subr.mxu0 0.0
          %557 = vmatpush2.msra.mxu0 0.0
          %558 = vmatprep.subr.mxu0 0.0
          %559 = vmatpush2.msra.mxu0 0.0
          %560 = vmatprep.subr.mxu0 0.0
          %561 = vmatpush2.msra.mxu0 0.0
          %562 = vmatprep.subr.mxu0 0.0
          %563 = vmatpush2.msra.mxu0 0.0
          %564 = vmatprep.subr.mxu0 0.0
          %565 = vmatpush2.msra.mxu0 0.0
          %566 = vmatprep.subr.mxu0 0.0
          %567 = vmatpush2.msra.mxu0 0.0
          %568 = vmatprep.subr.mxu0 0.0
          %569 = vmatpush2.msra.mxu0 0.0
          %570 = vmatprep.subr.mxu0 0.0
          %571 = vmatpush2.msra.mxu0 0.0
          %572 = vmatprep.subr.mxu0 0.0
          %573 = vmatpush2.msra.mxu0 0.0
          %574 = vmatprep.subr.mxu0 0.0
          %575 = vmatpush2.msra.mxu0 0.0
          %576 = vmatprep.subr.mxu0 0.0
          %577 = vmatpush2.msra.mxu0 0.0
          %578 = vmatprep.subr.mxu0 0.0
          %579 = vmatpush2.msra.mxu0 0.0
          %580 = vmatprep.subr.mxu0 0.0
          %581 = vmatpush2.msra.mxu0 0.0
          %582 = vmatprep.subr.mxu0 0.0
          %583 = vmatpush2.msra.mxu0 0.0
          %584 = vmatprep.subr.mxu0 0.0
          %585 = vmatpush2.msra.mxu0 0.0
          %586 = vmatprep.subr.mxu0 0.0
          %587 = vmatpush2.msra.mxu0 0.0
          %588 = vmatprep.mubr.f32.mxu0 0.0
          %589 = vmatmul.mubr.f32.gmra.mxu0 %v522
          %v590 = vpop.f32.mrf.mxu0
          %v591 = vadd.f32 0.0, %v590
          %v592 = vpop.f32.mrf.mxu0
          %593 = vdwg.mxu0
          %594 = vst.msk [vmem:[#allocation3] sm:$0xff] %vm441, %v591
        $region72: #{tpu_custom_call.1} parent=43 // pred_fallthru
          _
        %v595 = vld [vmem:[%s363] sm:$0xff]
        %v596 = vld [vmem:[#allocation10] sm:$0xff]
        %v597 = vld [vmem:[#allocation10 + $0x8] sm:$0xff]
        %v598 = vld [vmem:[#allocation10 + $0x10] sm:$0xff]
        %v599 = vld [vmem:[#allocation10 + $0x18] sm:$0xff]
        %vm600 = vcmask 261120
        %v602 = vsel %vm600, %v595, 0
        %604 = vmatprep.subr.mxu0 0.0
        %605 = vmatpush1.msra.mxu0 0.0
        %606 = vmatprep.subr.mxu0 0.0
        %607 = vmatpush1.msra.mxu0 0.0
        %608 = vmatprep.subr.mxu0 0.0
        %609 = vmatpush1.msra.mxu0 0.0
        %610 = vmatprep.subr.mxu0 0.0
        %611 = vmatpush1.msra.mxu0 0.0
        %612 = vmatprep.subr.mxu0 0.0
        %613 = vmatpush1.msra.mxu0 0.0
        %614 = vmatprep.subr.mxu0 0.0
        %615 = vmatpush1.msra.mxu0 0.0
        %616 = vmatprep.subr.mxu0 0.0
        %617 = vmatpush1.msra.mxu0 0.0
        %618 = vmatprep.subr.mxu0 0.0
        %619 = vmatpush1.msra.mxu0 0.0
        %620 = vmatprep.subr.mxu0 0.0
        %621 = vmatpush1.msra.mxu0 0.0
        %622 = vmatprep.subr.mxu0 0.0
        %623 = vmatpush1.msra.mxu0 0.0
        %624 = vmatprep.subr.mxu0 0.0
        %625 = vmatpush1.msra.mxu0 0.0
        %626 = vmatprep.subr.mxu0 0.0
        %627 = vmatpush1.msra.mxu0 0.0
        %628 = vmatprep.subr.mxu0 0.0
        %629 = vmatpush1.msra.mxu0 %v599
        %630 = vmatprep.subr.mxu0 0.0
        %631 = vmatpush1.msra.mxu0 %v598
        %632 = vmatprep.subr.mxu0 0.0
        %633 = vmatpush1.msra.mxu0 %v597
        %634 = vmatprep.subr.mxu0 0.0
        %635 = vmatpush1.msra.mxu0 %v596
        %636 = vmatprep.subr.mxu0 0.0
        %637 = vmatpush2.msra.mxu0 0.0
        %638 = vmatprep.subr.mxu0 0.0
        %639 = vmatpush2.msra.mxu0 0.0
        %640 = vmatprep.subr.mxu0 0.0
        %641 = vmatpush2.msra.mxu0 0.0
        %642 = vmatprep.subr.mxu0 0.0
        %643 = vmatpush2.msra.mxu0 0.0
        %644 = vmatprep.subr.mxu0 0.0
        %645 = vmatpush2.msra.mxu0 0.0
        %646 = vmatprep.subr.mxu0 0.0
        %647 = vmatpush2.msra.mxu0 0.0
        %648 = vmatprep.subr.mxu0 0.0
        %649 = vmatpush2.msra.mxu0 0.0
        %650 = vmatprep.subr.mxu0 0.0
        %651 = vmatpush2.msra.mxu0 0.0
        %652 = vmatprep.subr.mxu0 0.0
        %653 = vmatpush2.msra.mxu0 0.0
        %654 = vmatprep.subr.mxu0 0.0
        %655 = vmatpush2.msra.mxu0 0.0
        %656 = vmatprep.subr.mxu0 0.0
        %657 = vmatpush2.msra.mxu0 0.0
        %658 = vmatprep.subr.mxu0 0.0
        %659 = vmatpush2.msra.mxu0 0.0
        %660 = vmatprep.subr.mxu0 0.0
        %661 = vmatpush2.msra.mxu0 0.0
        %662 = vmatprep.subr.mxu0 0.0
        %663 = vmatpush2.msra.mxu0 0.0
        %664 = vmatprep.subr.mxu0 0.0
        %665 = vmatpush2.msra.mxu0 0.0
        %666 = vmatprep.subr.mxu0 0.0
        %667 = vmatpush2.msra.mxu0 0.0
        %668 = vmatprep.mubr.f32.mxu0 0.0
        %669 = vmatmul.mubr.f32.gmra.mxu0 %v602
        %v670 = vpop.f32.mrf.mxu0
        %v671 = vadd.f32 0.0, %v670
        %v672 = vpop.f32.mrf.mxu0
        %673 = vdwg.mxu0
        %v674 = vlaneseq
        %v675 = vshrl.u32 %v674, 7
        %s676 = smul.u32 %s35, 8
        %v677 = vstv %s676
        %v678 = vadd.s32 %v675, %v677
        %v679 = vlaneseq
        %v680 = vand.u32 %v679, 127
        %vm681 = vcmp.eq.s32.totalorder %v678, %v680
        %v682 = vld [vmem:[#allocation2] sm:$0xff]
        %v683 = vld [vmem:[#allocation3] sm:$0xff]
        %vm684 = vcmask 64512
        %v686 = vsel %vm684, %v671, 0
        %v689 = vsel %vm684, %v682, 0
        %691 = vmatprep.subr.mxu0 0.0
        %692 = vmatpush1.xpose.msra.mxu0 0.0
        %693 = vmatprep.subr.mxu0 0.0
        %694 = vmatpush1.xpose.msra.mxu0 0.0
        %695 = vmatprep.subr.mxu0 0.0
        %696 = vmatpush1.xpose.msra.mxu0 0.0
        %697 = vmatprep.subr.mxu0 0.0
        %698 = vmatpush1.xpose.msra.mxu0 0.0
        %699 = vmatprep.subr.mxu0 0.0
        %700 = vmatpush1.xpose.msra.mxu0 0.0
        %701 = vmatprep.subr.mxu0 0.0
        %702 = vmatpush1.xpose.msra.mxu0 0.0
        %703 = vmatprep.subr.mxu0 0.0
        %704 = vmatpush1.xpose.msra.mxu0 0.0
        %705 = vmatprep.subr.mxu0 0.0
        %706 = vmatpush1.xpose.msra.mxu0 0.0
        %707 = vmatprep.subr.mxu0 0.0
        %708 = vmatpush1.xpose.msra.mxu0 0.0
        %709 = vmatprep.subr.mxu0 0.0
        %710 = vmatpush1.xpose.msra.mxu0 0.0
        %711 = vmatprep.subr.mxu0 0.0
        %712 = vmatpush1.xpose.msra.mxu0 0.0
        %713 = vmatprep.subr.mxu0 0.0
        %714 = vmatpush1.xpose.msra.mxu0 0.0
        %715 = vmatprep.subr.mxu0 0.0
        %716 = vmatpush1.xpose.msra.mxu0 0.0
        %717 = vmatprep.subr.mxu0 0.0
        %718 = vmatpush1.xpose.msra.mxu0 0.0
        %719 = vmatprep.subr.mxu0 0.0
        %720 = vmatpush1.xpose.msra.mxu0 0.0
        %721 = vmatprep.subr.mxu0 0.0
        %722 = vmatpush1.xpose.msra.mxu0 %v689
        %723 = vmatprep.subr.mxu0 0.0
        %724 = vmatpush2.xpose.msra.mxu0 0.0
        %725 = vmatprep.subr.mxu0 0.0
        %726 = vmatpush2.xpose.msra.mxu0 0.0
        %727 = vmatprep.subr.mxu0 0.0
        %728 = vmatpush2.xpose.msra.mxu0 0.0
        %729 = vmatprep.subr.mxu0 0.0
        %730 = vmatpush2.xpose.msra.mxu0 0.0
        %731 = vmatprep.subr.mxu0 0.0
        %732 = vmatpush2.xpose.msra.mxu0 0.0
        %733 = vmatprep.subr.mxu0 0.0
        %734 = vmatpush2.xpose.msra.mxu0 0.0
        %735 = vmatprep.subr.mxu0 0.0
        %736 = vmatpush2.xpose.msra.mxu0 0.0
        %737 = vmatprep.subr.mxu0 0.0
        %738 = vmatpush2.xpose.msra.mxu0 0.0
        %739 = vmatprep.subr.mxu0 0.0
        %740 = vmatpush2.xpose.msra.mxu0 0.0
        %741 = vmatprep.subr.mxu0 0.0
        %742 = vmatpush2.xpose.msra.mxu0 0.0
        %743 = vmatprep.subr.mxu0 0.0
        %744 = vmatpush2.xpose.msra.mxu0 0.0
        %745 = vmatprep.subr.mxu0 0.0
        %746 = vmatpush2.xpose.msra.mxu0 0.0
        %747 = vmatprep.subr.mxu0 0.0
        %748 = vmatpush2.xpose.msra.mxu0 0.0
        %749 = vmatprep.subr.mxu0 0.0
        %750 = vmatpush2.xpose.msra.mxu0 0.0
        %751 = vmatprep.subr.mxu0 0.0
        %752 = vmatpush2.xpose.msra.mxu0 0.0
        %753 = vmatprep.subr.mxu0 0.0
        %754 = vmatpush2.xpose.msra.mxu0 0.0
        %755 = vmatprep.mubr.f32.mxu0 0.0
        %756 = vmatmul.mubr.f32.gmra.mxu0 %v686
        %v757 = vpop.f32.mrf.mxu0
        %v758 = vadd.f32 0.0, %v757
        %v759 = vpop.f32.mrf.mxu0
        %760 = vdwg.mxu0
        %v761 = vsel %vm681, -1e+30, %v758
        %v762 = vsel %vm684, %v761, -inf
        %763 = vmax.xlane.f32.xlu0 %v762
        %v764 = vpop.xlane.xlu0 %763
        %v765 = vsub.f32 %v761, %v764
        %v766 = vmul.f32 %v765, 1.442695
        %v767 = vpow.pop %v766
        %v768 = vsel %vm684, %v767, 0.0
        %769 = vadd.xlane.f32.xlu0 %v768
        %v770 = vpop.xlane.xlu0 %769
        %v771 = vrcp.pop %v770
        %v772 = vmul.f32 %v767, %v771
        %v774 = vsel %vm684, %v772, 0
        %776 = vmatprep.subr.mxu0 0.0
        %777 = vmatpush1.msra.mxu0 0.0
        %778 = vmatprep.subr.mxu0 0.0
        %779 = vmatpush1.msra.mxu0 0.0
        %780 = vmatprep.subr.mxu0 0.0
        %781 = vmatpush1.msra.mxu0 0.0
        %782 = vmatprep.subr.mxu0 0.0
        %783 = vmatpush1.msra.mxu0 0.0
        %784 = vmatprep.subr.mxu0 0.0
        %785 = vmatpush1.msra.mxu0 0.0
        %786 = vmatprep.subr.mxu0 0.0
        %787 = vmatpush1.msra.mxu0 0.0
        %788 = vmatprep.subr.mxu0 0.0
        %789 = vmatpush1.msra.mxu0 0.0
        %790 = vmatprep.subr.mxu0 0.0
        %791 = vmatpush1.msra.mxu0 0.0
        %792 = vmatprep.subr.mxu0 0.0
        %793 = vmatpush1.msra.mxu0 0.0
        %794 = vmatprep.subr.mxu0 0.0
        %795 = vmatpush1.msra.mxu0 0.0
        %796 = vmatprep.subr.mxu0 0.0
        %797 = vmatpush1.msra.mxu0 0.0
        %798 = vmatprep.subr.mxu0 0.0
        %799 = vmatpush1.msra.mxu0 0.0
        %800 = vmatprep.subr.mxu0 0.0
        %801 = vmatpush1.msra.mxu0 0.0
        %802 = vmatprep.subr.mxu0 0.0
        %803 = vmatpush1.msra.mxu0 0.0
        %804 = vmatprep.subr.mxu0 0.0
        %805 = vmatpush1.msra.mxu0 0.0
        %806 = vmatprep.subr.mxu0 0.0
        %807 = vmatpush1.msra.mxu0 %v683
        %808 = vmatprep.subr.mxu0 0.0
        %809 = vmatpush2.msra.mxu0 0.0
        %810 = vmatprep.subr.mxu0 0.0
        %811 = vmatpush2.msra.mxu0 0.0
        %812 = vmatprep.subr.mxu0 0.0
        %813 = vmatpush2.msra.mxu0 0.0
        %814 = vmatprep.subr.mxu0 0.0
        %815 = vmatpush2.msra.mxu0 0.0
        %816 = vmatprep.subr.mxu0 0.0
        %817 = vmatpush2.msra.mxu0 0.0
        %818 = vmatprep.subr.mxu0 0.0
        %819 = vmatpush2.msra.mxu0 0.0
        %820 = vmatprep.subr.mxu0 0.0
        %821 = vmatpush2.msra.mxu0 0.0
        %822 = vmatprep.subr.mxu0 0.0
        %823 = vmatpush2.msra.mxu0 0.0
        %824 = vmatprep.subr.mxu0 0.0
        %825 = vmatpush2.msra.mxu0 0.0
        %826 = vmatprep.subr.mxu0 0.0
        %827 = vmatpush2.msra.mxu0 0.0
        %828 = vmatprep.subr.mxu0 0.0
        %829 = vmatpush2.msra.mxu0 0.0
        %830 = vmatprep.subr.mxu0 0.0
        %831 = vmatpush2.msra.mxu0 0.0
        %832 = vmatprep.subr.mxu0 0.0
        %833 = vmatpush2.msra.mxu0 0.0
        %834 = vmatprep.subr.mxu0 0.0
        %835 = vmatpush2.msra.mxu0 0.0
        %836 = vmatprep.subr.mxu0 0.0
        %837 = vmatpush2.msra.mxu0 0.0
        %838 = vmatprep.subr.mxu0 0.0
        %839 = vmatpush2.msra.mxu0 0.0
        %840 = vmatprep.mubr.f32.mxu0 0.0
        %841 = vmatmul.mubr.f32.gmra.mxu0 %v774
        %v842 = vpop.f32.mrf.mxu0
        %v843 = vadd.f32 0.0, %v842
        %v844 = vpop.f32.mrf.mxu0
        %845 = vdwg.mxu0
        %846 = vst.msk [vmem:[%s431] sm:$0xff] %vm684, %v843
        %847 = vrot.lane.b32.xlu0 %v671, 120
        %v848 = vpop.permute.xlu0 %847
        %849 = vrot.lane.b32.xlu0 %v682, 120
        %v850 = vpop.permute.xlu0 %849
        %v851 = vsel %vm684, %v848, 0
        %v853 = vsel %vm684, %v850, 0
        %855 = vmatprep.subr.mxu0 0.0
        %856 = vmatpush1.xpose.msra.mxu0 0.0
        %857 = vmatprep.subr.mxu0 0.0
        %858 = vmatpush1.xpose.msra.mxu0 0.0
        %859 = vmatprep.subr.mxu0 0.0
        %860 = vmatpush1.xpose.msra.mxu0 0.0
        %861 = vmatprep.subr.mxu0 0.0
        %862 = vmatpush1.xpose.msra.mxu0 0.0
        %863 = vmatprep.subr.mxu0 0.0
        %864 = vmatpush1.xpose.msra.mxu0 0.0
        %865 = vmatprep.subr.mxu0 0.0
        %866 = vmatpush1.xpose.msra.mxu0 0.0
        %867 = vmatprep.subr.mxu0 0.0
        %868 = vmatpush1.xpose.msra.mxu0 0.0
        %869 = vmatprep.subr.mxu0 0.0
        %870 = vmatpush1.xpose.msra.mxu0 0.0
        %871 = vmatprep.subr.mxu0 0.0
        %872 = vmatpush1.xpose.msra.mxu0 0.0
        %873 = vmatprep.subr.mxu0 0.0
        %874 = vmatpush1.xpose.msra.mxu0 0.0
        %875 = vmatprep.subr.mxu0 0.0
        %876 = vmatpush1.xpose.msra.mxu0 0.0
        %877 = vmatprep.subr.mxu0 0.0
        %878 = vmatpush1.xpose.msra.mxu0 0.0
        %879 = vmatprep.subr.mxu0 0.0
        %880 = vmatpush1.xpose.msra.mxu0 0.0
        %881 = vmatprep.subr.mxu0 0.0
        %882 = vmatpush1.xpose.msra.mxu0 0.0
        %883 = vmatprep.subr.mxu0 0.0
        %884 = vmatpush1.xpose.msra.mxu0 0.0
        %885 = vmatprep.subr.mxu0 0.0
        %886 = vmatpush1.xpose.msra.mxu0 %v853
        %887 = vmatprep.subr.mxu0 0.0
        %888 = vmatpush2.xpose.msra.mxu0 0.0
        %889 = vmatprep.subr.mxu0 0.0
        %890 = vmatpush2.xpose.msra.mxu0 0.0
        %891 = vmatprep.subr.mxu0 0.0
        %892 = vmatpush2.xpose.msra.mxu0 0.0
        %893 = vmatprep.subr.mxu0 0.0
        %894 = vmatpush2.xpose.msra.mxu0 0.0
        %895 = vmatprep.subr.mxu0 0.0
        %896 = vmatpush2.xpose.msra.mxu0 0.0
        %897 = vmatprep.subr.mxu0 0.0
        %898 = vmatpush2.xpose.msra.mxu0 0.0
        %899 = vmatprep.subr.mxu0 0.0
        %900 = vmatpush2.xpose.msra.mxu0 0.0
        %901 = vmatprep.subr.mxu0 0.0
        %902 = vmatpush2.xpose.msra.mxu0 0.0
        %903 = vmatprep.subr.mxu0 0.0
        %904 = vmatpush2.xpose.msra.mxu0 0.0
        %905 = vmatprep.subr.mxu0 0.0
        %906 = vmatpush2.xpose.msra.mxu0 0.0
        %907 = vmatprep.subr.mxu0 0.0
        %908 = vmatpush2.xpose.msra.mxu0 0.0
        %909 = vmatprep.subr.mxu0 0.0
        %910 = vmatpush2.xpose.msra.mxu0 0.0
        %911 = vmatprep.subr.mxu0 0.0
        %912 = vmatpush2.xpose.msra.mxu0 0.0
        %913 = vmatprep.subr.mxu0 0.0
        %914 = vmatpush2.xpose.msra.mxu0 0.0
        %915 = vmatprep.subr.mxu0 0.0
        %916 = vmatpush2.xpose.msra.mxu0 0.0
        %917 = vmatprep.subr.mxu0 0.0
        %918 = vmatpush2.xpose.msra.mxu0 0.0
        %919 = vmatprep.mubr.f32.mxu0 0.0
        %920 = vmatmul.mubr.f32.gmra.mxu0 %v851
        %v921 = vpop.f32.mrf.mxu0
        %v922 = vadd.f32 0.0, %v921
        %v923 = vpop.f32.mrf.mxu0
        %924 = vdwg.mxu0
        %v925 = vsel %vm681, -1e+30, %v922
        %v926 = vsel %vm684, %v925, -inf
        %927 = vmax.xlane.f32.xlu0 %v926
        %v928 = vpop.xlane.xlu0 %927
        %v929 = vsub.f32 %v925, %v928
        %v930 = vmul.f32 %v929, 1.442695
        %v931 = vpow.pop %v930
        %v932 = vsel %vm684, %v931, 0.0
        %933 = vadd.xlane.f32.xlu0 %v932
        %v934 = vpop.xlane.xlu0 %933
        %v935 = vrcp.pop %v934
        %v936 = vmul.f32 %v931, %v935
        %938 = vrot.lane.b32.xlu0 %v683, 120
        %v939 = vpop.permute.xlu0 %938
        %v942 = vsel %vm684, %v936, 0
        %944 = vmatprep.subr.mxu0 0.0
        %945 = vmatpush1.msra.mxu0 0.0
        %946 = vmatprep.subr.mxu0 0.0
        %947 = vmatpush1.msra.mxu0 0.0
        %948 = vmatprep.subr.mxu0 0.0
        %949 = vmatpush1.msra.mxu0 0.0
        %950 = vmatprep.subr.mxu0 0.0
        %951 = vmatpush1.msra.mxu0 0.0
        %952 = vmatprep.subr.mxu0 0.0
        %953 = vmatpush1.msra.mxu0 0.0
        %954 = vmatprep.subr.mxu0 0.0
        %955 = vmatpush1.msra.mxu0 0.0
        %956 = vmatprep.subr.mxu0 0.0
        %957 = vmatpush1.msra.mxu0 0.0
        %958 = vmatprep.subr.mxu0 0.0
        %959 = vmatpush1.msra.mxu0 0.0
        %960 = vmatprep.subr.mxu0 0.0
        %961 = vmatpush1.msra.mxu0 0.0
        %962 = vmatprep.subr.mxu0 0.0
        %963 = vmatpush1.msra.mxu0 0.0
        %964 = vmatprep.subr.mxu0 0.0
        %965 = vmatpush1.msra.mxu0 0.0
        %966 = vmatprep.subr.mxu0 0.0
        %967 = vmatpush1.msra.mxu0 0.0
        %968 = vmatprep.subr.mxu0 0.0
        %969 = vmatpush1.msra.mxu0 0.0
        %970 = vmatprep.subr.mxu0 0.0
        %971 = vmatpush1.msra.mxu0 0.0
        %972 = vmatprep.subr.mxu0 0.0
        %973 = vmatpush1.msra.mxu0 0.0
        %974 = vmatprep.subr.mxu0 0.0
        %975 = vmatpush1.msra.mxu0 %v939
        %976 = vmatprep.subr.mxu0 0.0
        %977 = vmatpush2.msra.mxu0 0.0
        %978 = vmatprep.subr.mxu0 0.0
        %979 = vmatpush2.msra.mxu0 0.0
        %980 = vmatprep.subr.mxu0 0.0
        %981 = vmatpush2.msra.mxu0 0.0
        %982 = vmatprep.subr.mxu0 0.0
        %983 = vmatpush2.msra.mxu0 0.0
        %984 = vmatprep.subr.mxu0 0.0
        %985 = vmatpush2.msra.mxu0 0.0
        %986 = vmatprep.subr.mxu0 0.0
        %987 = vmatpush2.msra.mxu0 0.0
        %988 = vmatprep.subr.mxu0 0.0
        %989 = vmatpush2.msra.mxu0 0.0
        %990 = vmatprep.subr.mxu0 0.0
        %991 = vmatpush2.msra.mxu0 0.0
        %992 = vmatprep.subr.mxu0 0.0
        %993 = vmatpush2.msra.mxu0 0.0
        %994 = vmatprep.subr.mxu0 0.0
        %995 = vmatpush2.msra.mxu0 0.0
        %996 = vmatprep.subr.mxu0 0.0
        %997 = vmatpush2.msra.mxu0 0.0
        %998 = vmatprep.subr.mxu0 0.0
        %999 = vmatpush2.msra.mxu0 0.0
        %1000 = vmatprep.subr.mxu0 0.0
        %1001 = vmatpush2.msra.mxu0 0.0
        %1002 = vmatprep.subr.mxu0 0.0
        %1003 = vmatpush2.msra.mxu0 0.0
        %1004 = vmatprep.subr.mxu0 0.0
        %1005 = vmatpush2.msra.mxu0 0.0
        %1006 = vmatprep.subr.mxu0 0.0
        %1007 = vmatpush2.msra.mxu0 0.0
        %1008 = vmatprep.mubr.f32.mxu0 0.0
        %1009 = vmatmul.mubr.f32.gmra.mxu0 %v942
        %v1010 = vpop.f32.mrf.mxu0
        %v1011 = vadd.f32 0.0, %v1010
        %v1012 = vpop.f32.mrf.mxu0
        %1013 = vdwg.mxu0
        %1015 = vrot.lane.b32.xlu0 %v1011, 8
        %v1016 = vpop.permute.xlu0 %1015
        %vm1018 = vcmask 130112
        %1019 = vst.msk [vmem:[%s431] sm:$0xff] %vm1018, %v1016
        %1020 = vrot.lane.b32.xlu0 %v671, 112
        %v1021 = vpop.permute.xlu0 %1020
        %1022 = vrot.lane.b32.xlu0 %v682, 112
        %v1023 = vpop.permute.xlu0 %1022
        %v1024 = vsel %vm684, %v1021, 0
        %v1026 = vsel %vm684, %v1023, 0
        %1028 = vmatprep.subr.mxu0 0.0
        %1029 = vmatpush1.xpose.msra.mxu0 0.0
        %1030 = vmatprep.subr.mxu0 0.0
        %1031 = vmatpush1.xpose.msra.mxu0 0.0
        %1032 = vmatprep.subr.mxu0 0.0
        %1033 = vmatpush1.xpose.msra.mxu0 0.0
        %1034 = vmatprep.subr.mxu0 0.0
        %1035 = vmatpush1.xpose.msra.mxu0 0.0
        %1036 = vmatprep.subr.mxu0 0.0
        %1037 = vmatpush1.xpose.msra.mxu0 0.0
        %1038 = vmatprep.subr.mxu0 0.0
        %1039 = vmatpush1.xpose.msra.mxu0 0.0
        %1040 = vmatprep.subr.mxu0 0.0
        %1041 = vmatpush1.xpose.msra.mxu0 0.0
        %1042 = vmatprep.subr.mxu0 0.0
        %1043 = vmatpush1.xpose.msra.mxu0 0.0
        %1044 = vmatprep.subr.mxu0 0.0
        %1045 = vmatpush1.xpose.msra.mxu0 0.0
        %1046 = vmatprep.subr.mxu0 0.0
        %1047 = vmatpush1.xpose.msra.mxu0 0.0
        %1048 = vmatprep.subr.mxu0 0.0
        %1049 = vmatpush1.xpose.msra.mxu0 0.0
        %1050 = vmatprep.subr.mxu0 0.0
        %1051 = vmatpush1.xpose.msra.mxu0 0.0
        %1052 = vmatprep.subr.mxu0 0.0
        %1053 = vmatpush1.xpose.msra.mxu0 0.0
        %1054 = vmatprep.subr.mxu0 0.0
        %1055 = vmatpush1.xpose.msra.mxu0 0.0
        %1056 = vmatprep.subr.mxu0 0.0
        %1057 = vmatpush1.xpose.msra.mxu0 0.0
        %1058 = vmatprep.subr.mxu0 0.0
        %1059 = vmatpush1.xpose.msra.mxu0 %v1026
        %1060 = vmatprep.subr.mxu0 0.0
        %1061 = vmatpush2.xpose.msra.mxu0 0.0
        %1062 = vmatprep.subr.mxu0 0.0
        %1063 = vmatpush2.xpose.msra.mxu0 0.0
        %1064 = vmatprep.subr.mxu0 0.0
        %1065 = vmatpush2.xpose.msra.mxu0 0.0
        %1066 = vmatprep.subr.mxu0 0.0
        %1067 = vmatpush2.xpose.msra.mxu0 0.0
        %1068 = vmatprep.subr.mxu0 0.0
        %1069 = vmatpush2.xpose.msra.mxu0 0.0
        %1070 = vmatprep.subr.mxu0 0.0
        %1071 = vmatpush2.xpose.msra.mxu0 0.0
        %1072 = vmatprep.subr.mxu0 0.0
        %1073 = vmatpush2.xpose.msra.mxu0 0.0
        %1074 = vmatprep.subr.mxu0 0.0
        %1075 = vmatpush2.xpose.msra.mxu0 0.0
        %1076 = vmatprep.subr.mxu0 0.0
        %1077 = vmatpush2.xpose.msra.mxu0 0.0
        %1078 = vmatprep.subr.mxu0 0.0
        %1079 = vmatpush2.xpose.msra.mxu0 0.0
        %1080 = vmatprep.subr.mxu0 0.0
        %1081 = vmatpush2.xpose.msra.mxu0 0.0
        %1082 = vmatprep.subr.mxu0 0.0
        %1083 = vmatpush2.xpose.msra.mxu0 0.0
        %1084 = vmatprep.subr.mxu0 0.0
        %1085 = vmatpush2.xpose.msra.mxu0 0.0
        %1086 = vmatprep.subr.mxu0 0.0
        %1087 = vmatpush2.xpose.msra.mxu0 0.0
        %1088 = vmatprep.subr.mxu0 0.0
        %1089 = vmatpush2.xpose.msra.mxu0 0.0
        %1090 = vmatprep.subr.mxu0 0.0
        %1091 = vmatpush2.xpose.msra.mxu0 0.0
        %1092 = vmatprep.mubr.f32.mxu0 0.0
        %1093 = vmatmul.mubr.f32.gmra.mxu0 %v1024
        %v1094 = vpop.f32.mrf.mxu0
        %v1095 = vadd.f32 0.0, %v1094
        %v1096 = vpop.f32.mrf.mxu0
        %1097 = vdwg.mxu0
        %v1098 = vsel %vm681, -1e+30, %v1095
        %v1099 = vsel %vm684, %v1098, -inf
        %1100 = vmax.xlane.f32.xlu0 %v1099
        %v1101 = vpop.xlane.xlu0 %1100
        %v1102 = vsub.f32 %v1098, %v1101
        %v1103 = vmul.f32 %v1102, 1.442695
        %v1104 = vpow.pop %v1103
        %v1105 = vsel %vm684, %v1104, 0.0
        %1106 = vadd.xlane.f32.xlu0 %v1105
        %v1107 = vpop.xlane.xlu0 %1106
        %v1108 = vrcp.pop %v1107
        %v1109 = vmul.f32 %v1104, %v1108
        %1110 = vrot.lane.b32.xlu0 %v683, 112
        %v1111 = vpop.permute.xlu0 %1110
        %v1114 = vsel %vm684, %v1109, 0
        %1116 = vmatprep.subr.mxu0 0.0
        %1117 = vmatpush1.msra.mxu0 0.0
        %1118 = vmatprep.subr.mxu0 0.0
        %1119 = vmatpush1.msra.mxu0 0.0
        %1120 = vmatprep.subr.mxu0 0.0
        %1121 = vmatpush1.msra.mxu0 0.0
        %1122 = vmatprep.subr.mxu0 0.0
        %1123 = vmatpush1.msra.mxu0 0.0
        %1124 = vmatprep.subr.mxu0 0.0
        %1125 = vmatpush1.msra.mxu0 0.0
        %1126 = vmatprep.subr.mxu0 0.0
        %1127 = vmatpush1.msra.mxu0 0.0
        %1128 = vmatprep.subr.mxu0 0.0
        %1129 = vmatpush1.msra.mxu0 0.0
        %1130 = vmatprep.subr.mxu0 0.0
        %1131 = vmatpush1.msra.mxu0 0.0
        %1132 = vmatprep.subr.mxu0 0.0
        %1133 = vmatpush1.msra.mxu0 0.0
        %1134 = vmatprep.subr.mxu0 0.0
        %1135 = vmatpush1.msra.mxu0 0.0
        %1136 = vmatprep.subr.mxu0 0.0
        %1137 = vmatpush1.msra.mxu0 0.0
        %1138 = vmatprep.subr.mxu0 0.0
        %1139 = vmatpush1.msra.mxu0 0.0
        %1140 = vmatprep.subr.mxu0 0.0
        %1141 = vmatpush1.msra.mxu0 0.0
        %1142 = vmatprep.subr.mxu0 0.0
        %1143 = vmatpush1.msra.mxu0 0.0
        %1144 = vmatprep.subr.mxu0 0.0
        %1145 = vmatpush1.msra.mxu0 0.0
        %1146 = vmatprep.subr.mxu0 0.0
        %1147 = vmatpush1.msra.mxu0 %v1111
        %1148 = vmatprep.subr.mxu0 0.0
        %1149 = vmatpush2.msra.mxu0 0.0
        %1150 = vmatprep.subr.mxu0 0.0
        %1151 = vmatpush2.msra.mxu0 0.0
        %1152 = vmatprep.subr.mxu0 0.0
        %1153 = vmatpush2.msra.mxu0 0.0
        %1154 = vmatprep.subr.mxu0 0.0
        %1155 = vmatpush2.msra.mxu0 0.0
        %1156 = vmatprep.subr.mxu0 0.0
        %1157 = vmatpush2.msra.mxu0 0.0
        %1158 = vmatprep.subr.mxu0 0.0
        %1159 = vmatpush2.msra.mxu0 0.0
        %1160 = vmatprep.subr.mxu0 0.0
        %1161 = vmatpush2.msra.mxu0 0.0
        %1162 = vmatprep.subr.mxu0 0.0
        %1163 = vmatpush2.msra.mxu0 0.0
        %1164 = vmatprep.subr.mxu0 0.0
        %1165 = vmatpush2.msra.mxu0 0.0
        %1166 = vmatprep.subr.mxu0 0.0
        %1167 = vmatpush2.msra.mxu0 0.0
        %1168 = vmatprep.subr.mxu0 0.0
        %1169 = vmatpush2.msra.mxu0 0.0
        %1170 = vmatprep.subr.mxu0 0.0
        %1171 = vmatpush2.msra.mxu0 0.0
        %1172 = vmatprep.subr.mxu0 0.0
        %1173 = vmatpush2.msra.mxu0 0.0
        %1174 = vmatprep.subr.mxu0 0.0
        %1175 = vmatpush2.msra.mxu0 0.0
        %1176 = vmatprep.subr.mxu0 0.0
        %1177 = vmatpush2.msra.mxu0 0.0
        %1178 = vmatprep.subr.mxu0 0.0
        %1179 = vmatpush2.msra.mxu0 0.0
        %1180 = vmatprep.mubr.f32.mxu0 0.0
        %1181 = vmatmul.mubr.f32.gmra.mxu0 %v1114
        %v1182 = vpop.f32.mrf.mxu0
        %v1183 = vadd.f32 0.0, %v1182
        %v1184 = vpop.f32.mrf.mxu0
        %1185 = vdwg.mxu0
        %1187 = vrot.lane.b32.xlu0 %v1183, 16
        %v1188 = vpop.permute.xlu0 %1187
        %vm1190 = vcmask 195712
        %1191 = vst.msk [vmem:[%s431] sm:$0xff] %vm1190, %v1188
        %1192 = vrot.lane.b32.xlu0 %v671, 104
        %v1193 = vpop.permute.xlu0 %1192
        %1194 = vrot.lane.b32.xlu0 %v682, 104
        %v1195 = vpop.permute.xlu0 %1194
        %v1196 = vsel %vm684, %v1193, 0
        %v1198 = vsel %vm684, %v1195, 0
        %1200 = vmatprep.subr.mxu0 0.0
        %1201 = vmatpush1.xpose.msra.mxu0 0.0
        %1202 = vmatprep.subr.mxu0 0.0
        %1203 = vmatpush1.xpose.msra.mxu0 0.0
        %1204 = vmatprep.subr.mxu0 0.0
        %1205 = vmatpush1.xpose.msra.mxu0 0.0
        %1206 = vmatprep.subr.mxu0 0.0
        %1207 = vmatpush1.xpose.msra.mxu0 0.0
        %1208 = vmatprep.subr.mxu0 0.0
        %1209 = vmatpush1.xpose.msra.mxu0 0.0
        %1210 = vmatprep.subr.mxu0 0.0
        %1211 = vmatpush1.xpose.msra.mxu0 0.0
        %1212 = vmatprep.subr.mxu0 0.0
        %1213 = vmatpush1.xpose.msra.mxu0 0.0
        %1214 = vmatprep.subr.mxu0 0.0
        %1215 = vmatpush1.xpose.msra.mxu0 0.0
        %1216 = vmatprep.subr.mxu0 0.0
        %1217 = vmatpush1.xpose.msra.mxu0 0.0
        %1218 = vmatprep.subr.mxu0 0.0
        %1219 = vmatpush1.xpose.msra.mxu0 0.0
        %1220 = vmatprep.subr.mxu0 0.0
        %1221 = vmatpush1.xpose.msra.mxu0 0.0
        %1222 = vmatprep.subr.mxu0 0.0
        %1223 = vmatpush1.xpose.msra.mxu0 0.0
        %1224 = vmatprep.subr.mxu0 0.0
        %1225 = vmatpush1.xpose.msra.mxu0 0.0
        %1226 = vmatprep.subr.mxu0 0.0
        %1227 = vmatpush1.xpose.msra.mxu0 0.0
        %1228 = vmatprep.subr.mxu0 0.0
        %1229 = vmatpush1.xpose.msra.mxu0 0.0
        %1230 = vmatprep.subr.mxu0 0.0
        %1231 = vmatpush1.xpose.msra.mxu0 %v1198
        %1232 = vmatprep.subr.mxu0 0.0
        %1233 = vmatpush2.xpose.msra.mxu0 0.0
        %1234 = vmatprep.subr.mxu0 0.0
        %1235 = vmatpush2.xpose.msra.mxu0 0.0
        %1236 = vmatprep.subr.mxu0 0.0
        %1237 = vmatpush2.xpose.msra.mxu0 0.0
        %1238 = vmatprep.subr.mxu0 0.0
        %1239 = vmatpush2.xpose.msra.mxu0 0.0
        %1240 = vmatprep.subr.mxu0 0.0
        %1241 = vmatpush2.xpose.msra.mxu0 0.0
        %1242 = vmatprep.subr.mxu0 0.0
        %1243 = vmatpush2.xpose.msra.mxu0 0.0
        %1244 = vmatprep.subr.mxu0 0.0
        %1245 = vmatpush2.xpose.msra.mxu0 0.0
        %1246 = vmatprep.subr.mxu0 0.0
        %1247 = vmatpush2.xpose.msra.mxu0 0.0
        %1248 = vmatprep.subr.mxu0 0.0
        %1249 = vmatpush2.xpose.msra.mxu0 0.0
        %1250 = vmatprep.subr.mxu0 0.0
        %1251 = vmatpush2.xpose.msra.mxu0 0.0
        %1252 = vmatprep.subr.mxu0 0.0
        %1253 = vmatpush2.xpose.msra.mxu0 0.0
        %1254 = vmatprep.subr.mxu0 0.0
        %1255 = vmatpush2.xpose.msra.mxu0 0.0
        %1256 = vmatprep.subr.mxu0 0.0
        %1257 = vmatpush2.xpose.msra.mxu0 0.0
        %1258 = vmatprep.subr.mxu0 0.0
        %1259 = vmatpush2.xpose.msra.mxu0 0.0
        %1260 = vmatprep.subr.mxu0 0.0
        %1261 = vmatpush2.xpose.msra.mxu0 0.0
        %1262 = vmatprep.subr.mxu0 0.0
        %1263 = vmatpush2.xpose.msra.mxu0 0.0
        %1264 = vmatprep.mubr.f32.mxu0 0.0
        %1265 = vmatmul.mubr.f32.gmra.mxu0 %v1196
        %v1266 = vpop.f32.mrf.mxu0
        %v1267 = vadd.f32 0.0, %v1266
        %v1268 = vpop.f32.mrf.mxu0
        %1269 = vdwg.mxu0
        %v1270 = vsel %vm681, -1e+30, %v1267
        %v1271 = vsel %vm684, %v1270, -inf
        %1272 = vmax.xlane.f32.xlu0 %v1271
        %v1273 = vpop.xlane.xlu0 %1272
        %v1274 = vsub.f32 %v1270, %v1273
        %v1275 = vmul.f32 %v1274, 1.442695
        %v1276 = vpow.pop %v1275
        %v1277 = vsel %vm684, %v1276, 0.0
        %1278 = vadd.xlane.f32.xlu0 %v1277
        %v1279 = vpop.xlane.xlu0 %1278
        %v1280 = vrcp.pop %v1279
        %v1281 = vmul.f32 %v1276, %v1280
        %1282 = vrot.lane.b32.xlu0 %v683, 104
        %v1283 = vpop.permute.xlu0 %1282
        %v1286 = vsel %vm684, %v1281, 0
        %1288 = vmatprep.subr.mxu0 0.0
        %1289 = vmatpush1.msra.mxu0 0.0
        %1290 = vmatprep.subr.mxu0 0.0
        %1291 = vmatpush1.msra.mxu0 0.0
        %1292 = vmatprep.subr.mxu0 0.0
        %1293 = vmatpush1.msra.mxu0 0.0
        %1294 = vmatprep.subr.mxu0 0.0
        %1295 = vmatpush1.msra.mxu0 0.0
        %1296 = vmatprep.subr.mxu0 0.0
        %1297 = vmatpush1.msra.mxu0 0.0
        %1298 = vmatprep.subr.mxu0 0.0
        %1299 = vmatpush1.msra.mxu0 0.0
        %1300 = vmatprep.subr.mxu0 0.0
        %1301 = vmatpush1.msra.mxu0 0.0
        %1302 = vmatprep.subr.mxu0 0.0
        %1303 = vmatpush1.msra.mxu0 0.0
        %1304 = vmatprep.subr.mxu0 0.0
        %1305 = vmatpush1.msra.mxu0 0.0
        %1306 = vmatprep.subr.mxu0 0.0
        %1307 = vmatpush1.msra.mxu0 0.0
        %1308 = vmatprep.subr.mxu0 0.0
        %1309 = vmatpush1.msra.mxu0 0.0
        %1310 = vmatprep.subr.mxu0 0.0
        %1311 = vmatpush1.msra.mxu0 0.0
        %1312 = vmatprep.subr.mxu0 0.0
        %1313 = vmatpush1.msra.mxu0 0.0
        %1314 = vmatprep.subr.mxu0 0.0
        %1315 = vmatpush1.msra.mxu0 0.0
        %1316 = vmatprep.subr.mxu0 0.0
        %1317 = vmatpush1.msra.mxu0 0.0
        %1318 = vmatprep.subr.mxu0 0.0
        %1319 = vmatpush1.msra.mxu0 %v1283
        %1320 = vmatprep.subr.mxu0 0.0
        %1321 = vmatpush2.msra.mxu0 0.0
        %1322 = vmatprep.subr.mxu0 0.0
        %1323 = vmatpush2.msra.mxu0 0.0
        %1324 = vmatprep.subr.mxu0 0.0
        %1325 = vmatpush2.msra.mxu0 0.0
        %1326 = vmatprep.subr.mxu0 0.0
        %1327 = vmatpush2.msra.mxu0 0.0
        %1328 = vmatprep.subr.mxu0 0.0
        %1329 = vmatpush2.msra.mxu0 0.0
        %1330 = vmatprep.subr.mxu0 0.0
        %1331 = vmatpush2.msra.mxu0 0.0
        %1332 = vmatprep.subr.mxu0 0.0
        %1333 = vmatpush2.msra.mxu0 0.0
        %1334 = vmatprep.subr.mxu0 0.0
        %1335 = vmatpush2.msra.mxu0 0.0
        %1336 = vmatprep.subr.mxu0 0.0
        %1337 = vmatpush2.msra.mxu0 0.0
        %1338 = vmatprep.subr.mxu0 0.0
        %1339 = vmatpush2.msra.mxu0 0.0
        %1340 = vmatprep.subr.mxu0 0.0
        %1341 = vmatpush2.msra.mxu0 0.0
        %1342 = vmatprep.subr.mxu0 0.0
        %1343 = vmatpush2.msra.mxu0 0.0
        %1344 = vmatprep.subr.mxu0 0.0
        %1345 = vmatpush2.msra.mxu0 0.0
        %1346 = vmatprep.subr.mxu0 0.0
        %1347 = vmatpush2.msra.mxu0 0.0
        %1348 = vmatprep.subr.mxu0 0.0
        %1349 = vmatpush2.msra.mxu0 0.0
        %1350 = vmatprep.subr.mxu0 0.0
        %1351 = vmatpush2.msra.mxu0 0.0
        %1352 = vmatprep.mubr.f32.mxu0 0.0
        %1353 = vmatmul.mubr.f32.gmra.mxu0 %v1286
        %v1354 = vpop.f32.mrf.mxu0
        %v1355 = vadd.f32 0.0, %v1354
        %v1356 = vpop.f32.mrf.mxu0
        %1357 = vdwg.mxu0
        %1359 = vrot.lane.b32.xlu0 %v1355, 24
        %v1360 = vpop.permute.xlu0 %1359
        %vm1362 = vcmask 261312
        %1363 = vst.msk [vmem:[%s431] sm:$0xff] %vm1362, %v1360
        %s1364 = sand.u32 %s217, 1
        %s1365 = scalar_lea.sflag [#allocation6], %s1364
        %s1366 = sand.u32 %s217, 1
        %s1367 = smul.addr %s1366, 8
        %s1368 = scalar_lea.vmem [#allocation15], %s1367
        // Predicated region
        $region73: #{tpu_custom_call.1} parent=43 // pred_check
          %p1369 = pneg %p227
        $region74: #{tpu_custom_call.1} parent=43 // pred_check_branch
          %1371 = sbr.rel (%p1369) target = $region76
        $region75: #{tpu_custom_call.1} parent=43 // pred_region
          %s1373 = ssub.s32 128, 128
          %1374 = vsyncadd %s1365, %s1373
          %s1375 = sadd.s32 %s34, %s35
          %s1376 = sadd.s32 %s1375, %s33
          %s1377 = smul.addr %s1376, 128
          %s1378 = scalar_lea.hbm %s6, %s1377
          %s1380 = sshll.u32 %s1368, 4
          %s1381 = int_to_ptr.vmem [resolvable:$true] %s1380
          %1383 = dma.vmem_to_hbm [thread:$0]  %s1381, 128, %s1378, %s1365
        $region76: #{tpu_custom_call.1} parent=43 // pred_fallthru
          _
      $region44: #{tpu_custom_call.1} parent=5 // pred_fallthru
        _
      %p1384 = scmp.le.s32.totalorder 2, %s23
      // Predicated region
      $region77: #{tpu_custom_call.1} parent=5 // pred_check
        %p1385 = pneg %p1384
      $region78: #{tpu_custom_call.1} parent=5 // pred_check_branch
        %1387 = sbr.rel (%p1385) target = $region80
      $region79: #{tpu_custom_call.1} parent=5 // pred_region
        %s1388 = ssub.s32 %s23, 2
        // Predicated region
        $region81: #{tpu_custom_call.1} parent=79 // pred_check
          %p1389 = pneg %p233
        $region82: #{tpu_custom_call.1} parent=79 // pred_check_branch
          %1391 = sbr.rel (%p1389) target = $region84
        $region83: #{tpu_custom_call.1} parent=79 // pred_region
          %s1392 = sand.u32 %s218, 1
          %s1393 = scalar_lea.sflag [#allocation6], %s1392
          %s1394 = sand.u32 %s218, 1
          %s1395 = smul.addr %s1394, 8
          %s1396 = scalar_lea.vmem [#allocation15], %s1395
          %1397 = dma.done %s1393, 128
        $region84: #{tpu_custom_call.1} parent=79 // pred_fallthru
          _
      $region80: #{tpu_custom_call.1} parent=5 // pred_fallthru
        _
    $region6: #{tpu_custom_call.1} parent=1 // loop_footer
      %s27 = sadd.s32 1, %s23
    $region7: #{tpu_custom_call.1} parent=1 // loop_footer_branch
      %22 = sbr.rel target = $region3
    $region8: #{tpu_custom_call.1} parent=1 // loop_exit
      _
    %1398 = vsyncpa [#allocation5], 1
    %s1399 = scalar_lea.sflag [#allocation5], 1
    %1400 = vsyncpa %s1399, 1
    %1401 = vsyncpa [#allocation8], 1
    %s1402 = scalar_lea.sflag [#allocation8], 1
    %1403 = vsyncpa %s1402, 1
    %1404 = vsyncpa [#allocation11], 1
    %1405 = vsyncpa [#allocation14], 1
    %1406 = vsyncpa [#allocation6], 1
    %s1407 = scalar_lea.sflag [#allocation6], 1
    %1408 = vsyncpa %s1407, 1

</llo_original>
